<compile_context>
chip_gen: v7x
topology: tpu7x:2x2x1
jax: 0.10.0
libtpu: 0.0.40
codegen_flags: <defaults>
</compile_context>

<pallas_src>
import jax
import jax.numpy as jnp
from jax.experimental import pallas as pl
from jax.experimental.pallas import tpu as pltpu

EPS = 1e-5


def _pick_tile(cout, tile_cout):
    """Largest divisor of cout that is <= tile_cout and a multiple of 8 (else full cout)."""
    if cout <= tile_cout:
        return cout
    for t in range(min(tile_cout, cout), 7, -1):
        if cout % t == 0 and t % 8 == 0:
            return t
    return cout


def _make_kernel(tc, m):
    inv_m = 1.0 / float(m)

    def kernel(x1_ref, x2_ref, w_ref, gamma_ref, beta_ref, out_ref, a_ref):
        # x1, x2     : (Cin, M) f32   -- resident (constant index_map), read only at step 0
        # w          : (tc, Cin) bf16 -- per-step weight slab (pipelined / double-buffered)
        # gamma/beta : (Cout, 1) f32  -- resident, sliced per step
        # out        : (tc, M) f32
        # a (scratch): (Cin, M) bf16  -- relu(x1+x2), computed once, persists across steps
        j = pl.program_id(0)

        @pl.when(j == 0)
        def _init_activation():
            # add + ReLU in f32 (VPU), cached as bf16 for the MXU.
            a_ref[...] = jnp.maximum(x1_ref[...] + x2_ref[...], 0.0).astype(jnp.bfloat16)

        # 1x1 conv == matmul on the MXU: bf16 operands, f32 accumulation.
        y = jnp.dot(w_ref[...], a_ref[...], preferred_element_type=jnp.float32)  # (tc, M)

        # Single-pass batch stats over N*H*W (per output channel), biased variance
        # exactly as PyTorch BN uses for normalization in training mode.
        s1 = jnp.sum(y, axis=1, keepdims=True)
        s2 = jnp.sum(y * y, axis=1, keepdims=True)
        mean = s1 * inv_m
        var = s2 * inv_m - mean * mean
        inv_std = jax.lax.rsqrt(var + EPS)

        # Resident affine params: slice this tile's rows.
        off = pl.multiple_of(j * tc, 8)
        gamma = gamma_ref[pl.ds(off, tc), :]
        beta = beta_ref[pl.ds(off, tc), :]

        # Fold BN into a single scale/bias applied to y (no centered temporary).
        scale = gamma * inv_std
        bias = beta - mean * scale
        out_ref[...] = (y * scale + bias).astype(out_ref.dtype)

    return kernel


def fused_add_relu_conv1x1_bn(x118, x110, weight, gamma, beta, *, tile_cout=256):
    """x118, x110: (N, C, H, W) f32.  weight: (Cout, Cin, 1, 1).  gamma/beta: (Cout,)."""
    n, c, h, w = x118.shape
    cout, cin = weight.shape[0], weight.shape[1]
    assert cin == c
    m = n * h * w

    # Channel-major (C, M).  For N == 1 (the module's case) this is a free reshape of NCHW.
    if n == 1:
        x1 = x118.reshape(c, m)
        x2 = x110.reshape(c, m)
    else:
        x1 = jnp.transpose(x118, (1, 0, 2, 3)).reshape(c, m)
        x2 = jnp.transpose(x110, (1, 0, 2, 3)).reshape(c, m)

    # (Cout, Cin) weight in bf16: halves the dominant HBM stream and enables the fast
    # bf16 MXU path (f32 accumulation inside the kernel).
    w_mat = weight.reshape(cout, cin).astype(jnp.bfloat16)
    g = gamma.astype(jnp.float32).reshape(cout, 1)
    b = beta.astype(jnp.float32).reshape(cout, 1)

    tc = _pick_tile(cout, tile_cout)
    grid = (cout // tc,)

    out = pl.pallas_call(
        _make_kernel(tc, m),
        out_shape=jax.ShapeDtypeStruct((cout, m), jnp.float32),
        grid_spec=pltpu.PrefetchScalarGridSpec(
            num_scalar_prefetch=0,
            grid=grid,
            in_specs=[
                pl.BlockSpec((c, m), lambda j: (0, 0)),      # x1: DMA'd once, resident
                pl.BlockSpec((c, m), lambda j: (0, 0)),      # x2: DMA'd once, resident
                pl.BlockSpec((tc, c), lambda j: (j, 0)),     # bf16 weight slab, pipelined
                pl.BlockSpec((cout, 1), lambda j: (0, 0)),   # gamma: resident
                pl.BlockSpec((cout, 1), lambda j: (0, 0)),   # beta : resident
            ],
            out_specs=pl.BlockSpec((tc, m), lambda j: (j, 0)),
            scratch_shapes=[pltpu.VMEM((c, m), jnp.bfloat16)],  # cached relu(x1+x2)
        ),
        compiler_params=pltpu.CompilerParams(
            # "arbitrary": sequential grid so the program_id==0-gated activation cache is
            # correct on every chip generation (see module docstring note on v7x).
            dimension_semantics=("arbitrary",),
            vmem_limit_bytes=32 * 1024 * 1024,
        ),
    )(x1, x2, w_mat, g, b)

    # (Cout, M) maps straight back to NCHW when N == 1.
    if n == 1:
        return out.reshape(1, cout, h, w)
    return jnp.transpose(out.reshape(cout, n, h, w), (1, 0, 2, 3))


def _reference(x118, x110, weight, gamma, beta):
    a = jnp.maximum(x118 + x110, 0.0)
    w2d = weight.reshape(weight.shape[0], weight.shape[1])
    y = jnp.einsum("oi,nihw->nohw", w2d, a, precision=jax.lax.Precision.HIGHEST)
    mean = jnp.mean(y, axis=(0, 2, 3), keepdims=True)
    var = jnp.mean((y - mean) ** 2, axis=(0, 2, 3), keepdims=True)
    yn = (y - mean) * jax.lax.rsqrt(var + EPS)
    return yn * gamma.reshape(1, -1, 1, 1) + beta.reshape(1, -1, 1, 1)


if __name__ == "__main__":
    # Small shapes consistent with the module (original: N=1, C=1024, H=W=14).
    N, C, H, W = 1, 256, 14, 14

    key = jax.random.PRNGKey(0)
    k1, k2, k3 = jax.random.split(key, 3)
    x118 = jax.random.normal(k1, (N, C, H, W), dtype=jnp.float32)
    x110 = jax.random.normal(k2, (N, C, H, W), dtype=jnp.float32)
    # Conv2d(C, C, 1, bias=False) weight: (Cout, Cin, 1, 1)
    weight = jax.random.normal(k3, (C, C, 1, 1), dtype=jnp.float32) * (1.0 / jnp.sqrt(C))
    # Non-trivial affine BN params to exercise gamma/beta paths.
    ch = jnp.arange(C, dtype=jnp.float32)
    gamma = 1.0 + 0.1 * jnp.cos(ch)
    beta = 0.05 * jnp.sin(ch)

    # tile_cout=128 here so the small test still exercises a multi-step grid and the
    # cached-activation path (default 256 is used at the module's real Cout=1024).
    out = jax.block_until_ready(
        fused_add_relu_conv1x1_bn(x118, x110, weight, gamma, beta, tile_cout=128)
    )
    ref = _reference(x118, x110, weight, gamma, beta)

    assert out.shape == (N, C, H, W)
    # bf16 MXU operands (f32 accumulation) give ~1e-3 RMS / <1e-2 max abs error vs the
    # f32 HIGHEST-precision reference; tolerance set accordingly.
    assert jnp.allclose(out, ref, atol=1e-2, rtol=1e-2), float(jnp.max(jnp.abs(out - ref)))

    print("KERNEL_OK")
</pallas_src>

<mosaic_0001>
module attributes {stable_mosaic.version = 11 : i64} {
  func.func @kernel(%arg0: i32, %arg1: memref<256x196xf32, #tpu.memory_space<vmem>>, %arg2: memref<256x196xf32, #tpu.memory_space<vmem>>, %arg3: memref<128x256xbf16, #tpu.memory_space<vmem>>, %arg4: memref<256x1xf32, #tpu.memory_space<vmem>>, %arg5: memref<256x1xf32, #tpu.memory_space<vmem>>, %arg6: memref<128x196xf32, #tpu.memory_space<vmem>>, %arg7: memref<256x196xbf16, #tpu.memory_space<vmem>>) attributes {dimension_semantics = [#tpu.dimension_semantics<arbitrary>], iteration_bounds = array<i64: 2>, scalar_prefetch = 0 : i64, scratch_operands = 1 : i64, tpu.core_type = #tpu.core_type<tc>, window_params = [{pipeline_mode = #tpu.pipeline_mode<synchronous>, transform_indices = @transform_0, window_bounds = array<i64: 256, 196>}, {pipeline_mode = #tpu.pipeline_mode<synchronous>, transform_indices = @transform_1, window_bounds = array<i64: 256, 196>}, {transform_indices = @transform_2, window_bounds = array<i64: 128, 256>}, {pipeline_mode = #tpu.pipeline_mode<synchronous>, transform_indices = @transform_3, window_bounds = array<i64: 256, 1>}, {pipeline_mode = #tpu.pipeline_mode<synchronous>, transform_indices = @transform_4, window_bounds = array<i64: 256, 1>}, {transform_indices = @transform_5, window_bounds = array<i64: 128, 196>}]} {
    %c0_i32 = arith.constant 0 : i32
    %0 = arith.cmpi eq, %arg0, %c0_i32 : i32
    %1 = arith.extui %0 : i1 to i32
    %c0_i32_0 = arith.constant 0 : i32
    %2 = arith.cmpi ne, %1, %c0_i32_0 : i32
    scf.if %2 {
      %c0_13 = arith.constant 0 : index
      %c0_14 = arith.constant 0 : index
      %34 = vector.load %arg1[%c0_13, %c0_14] : memref<256x196xf32, #tpu.memory_space<vmem>>, vector<256x196xf32>
      %c0_15 = arith.constant 0 : index
      %c0_16 = arith.constant 0 : index
      %35 = vector.load %arg2[%c0_15, %c0_16] : memref<256x196xf32, #tpu.memory_space<vmem>>, vector<256x196xf32>
      %36 = arith.addf %34, %35 : vector<256x196xf32>
      %cst_17 = arith.constant 0.000000e+00 : f32
      %37 = vector.broadcast %cst_17 : f32 to vector<256x196xf32>
      %38 = arith.maximumf %36, %37 : vector<256x196xf32>
      %39 = arith.truncf %38 : vector<256x196xf32> to vector<256x196xbf16>
      %c0_18 = arith.constant 0 : index
      %c0_19 = arith.constant 0 : index
      %40 = vector.load %arg7[%c0_18, %c0_19] : memref<256x196xbf16, #tpu.memory_space<vmem>>, vector<256x196xbf16>
      tpu.vector_store %arg7[%c0_18, %c0_19], %39 {strides = array<i32>} : memref<256x196xbf16, #tpu.memory_space<vmem>>, vector<256x196xbf16>,
    } else {
    }
    %c0 = arith.constant 0 : index
    %c0_1 = arith.constant 0 : index
    %3 = vector.load %arg3[%c0, %c0_1] : memref<128x256xbf16, #tpu.memory_space<vmem>>, vector<128x256xbf16>
    %c0_2 = arith.constant 0 : index
    %c0_3 = arith.constant 0 : index
    %4 = vector.load %arg7[%c0_2, %c0_3] : memref<256x196xbf16, #tpu.memory_space<vmem>>, vector<256x196xbf16>
    %cst = arith.constant dense<0.000000e+00> : vector<128x196xf32>
    %5 = tpu.matmul %3, %4, %cst {dimension_numbers = #tpu.dot_dimension_numbers<[1], [0], [0], [1], [0, 0, 1, 1], [], []>} : vector<128x256xbf16>, vector<256x196xbf16>, vector<128x196xf32> -> vector<128x196xf32>
    %cst_4 = arith.constant dense<0.000000e+00> : vector<128xf32>
    %6 = vector.multi_reduction <add>, %5, %cst_4 [1] : vector<128x196xf32> to vector<128xf32>
    %7 = vector.shape_cast %6 : vector<128xf32> to vector<128x1xf32>
    %8 = arith.mulf %5, %5 : vector<128x196xf32>
    %cst_5 = arith.constant dense<0.000000e+00> : vector<128xf32>
    %9 = vector.multi_reduction <add>, %8, %cst_5 [1] : vector<128x196xf32> to vector<128xf32>
    %10 = vector.shape_cast %9 : vector<128xf32> to vector<128x1xf32>
    %cst_6 = arith.constant 0.00510204071 : f32
    %11 = vector.broadcast %cst_6 : f32 to vector<128x1xf32>
    %12 = arith.mulf %7, %11 : vector<128x1xf32>
    %cst_7 = arith.constant 0.00510204071 : f32
    %13 = vector.broadcast %cst_7 : f32 to vector<128x1xf32>
    %14 = arith.mulf %10, %13 : vector<128x1xf32>
    %15 = arith.mulf %12, %12 : vector<128x1xf32>
    %16 = arith.subf %14, %15 : vector<128x1xf32>
    %cst_8 = arith.constant 9.99999974E-6 : f32
    %17 = vector.broadcast %cst_8 : f32 to vector<128x1xf32>
    %18 = arith.addf %16, %17 : vector<128x1xf32>
    %19 = math.rsqrt %18 : vector<128x1xf32>
    %c128_i32 = arith.constant 128 : i32
    %20 = arith.muli %arg0, %c128_i32 : i32
    %21 = tpu.assume_multiple %20, 8 : i32
    %22 = arith.index_cast %21 : i32 to index
    %c0_9 = arith.constant 0 : index
    %23 = vector.load %arg4[%22, %c0_9] : memref<256x1xf32, #tpu.memory_space<vmem>>, vector<128x1xf32>
    %24 = arith.index_cast %21 : i32 to index
    %c0_10 = arith.constant 0 : index
    %25 = vector.load %arg5[%24, %c0_10] : memref<256x1xf32, #tpu.memory_space<vmem>>, vector<128x1xf32>
    %26 = arith.mulf %23, %19 : vector<128x1xf32>
    %27 = arith.mulf %12, %26 : vector<128x1xf32>
    %28 = arith.subf %25, %27 : vector<128x1xf32>
    %29 = vector.broadcast %26 : vector<128x1xf32> to vector<128x196xf32>
    %30 = arith.mulf %5, %29 : vector<128x196xf32>
    %31 = vector.broadcast %28 : vector<128x1xf32> to vector<128x196xf32>
    %32 = arith.addf %30, %31 : vector<128x196xf32>
    %c0_11 = arith.constant 0 : index
    %c0_12 = arith.constant 0 : index
    %33 = vector.load %arg6[%c0_11, %c0_12] : memref<128x196xf32, #tpu.memory_space<vmem>>, vector<128x196xf32>
    tpu.vector_store %arg6[%c0_11, %c0_12], %32 {strides = array<i32>} : memref<128x196xf32, #tpu.memory_space<vmem>>, vector<128x196xf32>,
    return
  }
  func.func @transform_0(%arg0: i32) -> (i32, i32) {
    %c0_i32 = arith.constant 0 : i32
    %c0_i32_0 = arith.constant 0 : i32
    %c0_i32_1 = arith.constant 0 : i32
    return %c0_i32, %c0_i32_0 : i32, i32
  }
  func.func @transform_1(%arg0: i32) -> (i32, i32) {
    %c0_i32 = arith.constant 0 : i32
    %c0_i32_0 = arith.constant 0 : i32
    %c0_i32_1 = arith.constant 0 : i32
    return %c0_i32, %c0_i32_0 : i32, i32
  }
  func.func @transform_2(%arg0: i32) -> (i32, i32) {
    %c0_i32 = arith.constant 0 : i32
    %c0_i32_0 = arith.constant 0 : i32
    return %arg0, %c0_i32 : i32, i32
  }
  func.func @transform_3(%arg0: i32) -> (i32, i32) {
    %c0_i32 = arith.constant 0 : i32
    %c0_i32_0 = arith.constant 0 : i32
    %c0_i32_1 = arith.constant 0 : i32
    return %c0_i32, %c0_i32_0 : i32, i32
  }
  func.func @transform_4(%arg0: i32) -> (i32, i32) {
    %c0_i32 = arith.constant 0 : i32
    %c0_i32_0 = arith.constant 0 : i32
    %c0_i32_1 = arith.constant 0 : i32
    return %c0_i32, %c0_i32_0 : i32, i32
  }
  func.func @transform_5(%arg0: i32) -> (i32, i32) {
    %c0_i32 = arith.constant 0 : i32
    %c0_i32_0 = arith.constant 0 : i32
    return %arg0, %c0_i32 : i32, i32
  }
}

</mosaic_0001>

<llo_original>
// kernel: tpu_custom_call.1
$region0: #{tpu_custom_call.1}
  #allocation0 [shape = 'u32[]', space=smem, size = 0x4, offset = 0x4, fixed_abs, tag = 'smem constant byte address 0x4 - core index']
  #allocation1 [shape = 'u32[144,128]{1,0:T(1,128)}', space=vmem, size = 0x12000, scoped, tag = 'internal scratch']
  #allocation2 [shape = 'bf16[256,196]{1,0:T(16,128)(2,1)}', space=vmem, size = 0x20000, scoped, tag = 'scratch operand']
  %s0 = inlined_call_operand.vmem [shape: f32[256,196], index: 0, kind: input, shape index: {}]
  %s1 = inlined_call_operand.vmem [shape: f32[256,196], index: 1, kind: input, shape index: {}]
  %s2 = inlined_call_operand.vmem [shape: bf16[256,256], index: 2, kind: input, shape index: {}]
  %s3 = inlined_call_operand.vmem [shape: f32[256,1], index: 3, kind: input, shape index: {}]
  %s4 = inlined_call_operand.vmem [shape: f32[256,1], index: 4, kind: input, shape index: {}]
  %s5 = inlined_call_operand.vmem [shape: f32[256,196], index: 5, kind: output, shape index: {}]
  %s6 = sld [smem:[#allocation0]]
  $region57: #{tpu_custom_call.1} parent=0
    _
  %s8 = ssub.s32 1, %s6
  %s9 = scalar_select 0, %s8, %s6
  loop: start=0, step=1, limit=4
  $region2: #{tpu_custom_call.1} parent=0 // loop_pre_header
    _
  $region3: #{tpu_custom_call.1} parent=0 // loop_header
    %s11 = sphi 0, %s15
    %p12 = scmp.ge.s32.totalorder %s11, 4
    %s19 = sphi 0, %s19
    %s21 = sphi 0, %s19
    %s22 = sphi 0, %s21
    %s36 = sphi 0, %s22
    %s40 = sphi 0, %s40
    %s42 = sphi 0, %s40
    %s43 = sphi 0, %s42
    %s57 = sphi 0, %s43
    %s63 = sphi 0, %s65
    %s66 = sphi 0, %s63
    %s67 = sphi 0, %s66
    %s83 = sphi 0, %s67
    %s87 = sphi 0, %s87
    %s89 = sphi 0, %s87
    %s90 = sphi 0, %s89
    %s104 = sphi 0, %s90
    %s108 = sphi 0, %s108
    %s110 = sphi 0, %s108
    %s111 = sphi 0, %s110
    %s125 = sphi 0, %s111
    %s131 = sphi 0, %s133
    %s134 = sphi 0, %s131
    %s135 = sphi 0, %s134
    %s151 = sphi 0, %s135
  $region4: #{tpu_custom_call.1} parent=0 // loop_header_branch
    %14 = sbr.rel (%p12) target = $region8
  $region5: #{tpu_custom_call.1} parent=0 // loop_body
    %s16 = ssub.s32 %s11, 1
    %s17 = ssub.s32 %s11, 2
    %s18 = sadd.s32 %s11, 1
    %s20 = sadd.s32 %s19, 1
    %p23 = scmp.eq.s32.totalorder %s11, 1
    %p24 = scmp.ne.s32.totalorder %s19, %s21
    %p25 = scmp.eq.s32.totalorder %s11, 0
    %p26 = por %p24, %p25
    %p27 = scmp.ne.s32.totalorder %s19, %s21
    %p28 = scmp.eq.s32.totalorder %s16, 1
    %p29 = por %p27, %p28
    %p30 = scmp.ne.s32.totalorder %s21, %s22
    %p31 = scmp.eq.s32.totalorder %s16, 0
    %p32 = por %p30, %p31
    %p33 = scmp.ne.s32.totalorder %s21, %s22
    %p34 = scmp.eq.s32.totalorder %s17, 1
    %p35 = por %p33, %p34
    %p37 = scmp.ne.s32.totalorder %s22, %s36
    %p38 = scmp.eq.s32.totalorder %s17, 0
    %p39 = por %p37, %p38
    %s41 = sadd.s32 %s40, 1
    %p44 = scmp.eq.s32.totalorder %s11, 1
    %p45 = scmp.ne.s32.totalorder %s40, %s42
    %p46 = scmp.eq.s32.totalorder %s11, 0
    %p47 = por %p45, %p46
    %p48 = scmp.ne.s32.totalorder %s40, %s42
    %p49 = scmp.eq.s32.totalorder %s16, 1
    %p50 = por %p48, %p49
    %p51 = scmp.ne.s32.totalorder %s42, %s43
    %p52 = scmp.eq.s32.totalorder %s16, 0
    %p53 = por %p51, %p52
    %p54 = scmp.ne.s32.totalorder %s42, %s43
    %p55 = scmp.eq.s32.totalorder %s17, 1
    %p56 = por %p54, %p55
    %p58 = scmp.ne.s32.totalorder %s43, %s57
    %p59 = scmp.eq.s32.totalorder %s17, 0
    %p60 = por %p58, %p59
    %s61 = ssub.s32 %s11, %s18
    %p62 = scmp.eq.s32.totalorder %s61, 0
    %s64 = sadd.s32 %s63, 1
    %s65 = scalar_select %p62, %s63, %s64
    %p68 = pneg %p62
    %p69 = scmp.eq.s32.totalorder %s11, 1
    %p70 = por %p68, %p69
    %p71 = scmp.ne.s32.totalorder %s63, %s66
    %p72 = scmp.eq.s32.totalorder %s11, 0
    %p73 = por %p71, %p72
    %p74 = scmp.ne.s32.totalorder %s63, %s66
    %p75 = scmp.eq.s32.totalorder %s16, 1
    %p76 = por %p74, %p75
    %p77 = scmp.ne.s32.totalorder %s66, %s67
    %p78 = scmp.eq.s32.totalorder %s16, 0
    %p79 = por %p77, %p78
    %p80 = scmp.ne.s32.totalorder %s66, %s67
    %p81 = scmp.eq.s32.totalorder %s17, 1
    %p82 = por %p80, %p81
    %p84 = scmp.ne.s32.totalorder %s67, %s83
    %p85 = scmp.eq.s32.totalorder %s17, 0
    %p86 = por %p84, %p85
    %s88 = sadd.s32 %s87, 1
    %p91 = scmp.eq.s32.totalorder %s11, 1
    %p92 = scmp.ne.s32.totalorder %s87, %s89
    %p93 = scmp.eq.s32.totalorder %s11, 0
    %p94 = por %p92, %p93
    %p95 = scmp.ne.s32.totalorder %s87, %s89
    %p96 = scmp.eq.s32.totalorder %s16, 1
    %p97 = por %p95, %p96
    %p98 = scmp.ne.s32.totalorder %s89, %s90
    %p99 = scmp.eq.s32.totalorder %s16, 0
    %p100 = por %p98, %p99
    %p101 = scmp.ne.s32.totalorder %s89, %s90
    %p102 = scmp.eq.s32.totalorder %s17, 1
    %p103 = por %p101, %p102
    %p105 = scmp.ne.s32.totalorder %s90, %s104
    %p106 = scmp.eq.s32.totalorder %s17, 0
    %p107 = por %p105, %p106
    %s109 = sadd.s32 %s108, 1
    %p112 = scmp.eq.s32.totalorder %s11, 1
    %p113 = scmp.ne.s32.totalorder %s108, %s110
    %p114 = scmp.eq.s32.totalorder %s11, 0
    %p115 = por %p113, %p114
    %p116 = scmp.ne.s32.totalorder %s108, %s110
    %p117 = scmp.eq.s32.totalorder %s16, 1
    %p118 = por %p116, %p117
    %p119 = scmp.ne.s32.totalorder %s110, %s111
    %p120 = scmp.eq.s32.totalorder %s16, 0
    %p121 = por %p119, %p120
    %p122 = scmp.ne.s32.totalorder %s110, %s111
    %p123 = scmp.eq.s32.totalorder %s17, 1
    %p124 = por %p122, %p123
    %p126 = scmp.ne.s32.totalorder %s111, %s125
    %p127 = scmp.eq.s32.totalorder %s17, 0
    %p128 = por %p126, %p127
    %s129 = ssub.s32 %s11, %s18
    %p130 = scmp.eq.s32.totalorder %s129, 0
    %s132 = sadd.s32 %s131, 1
    %s133 = scalar_select %p130, %s131, %s132
    %p136 = pneg %p130
    %p137 = scmp.eq.s32.totalorder %s11, 1
    %p138 = por %p136, %p137
    %p139 = scmp.ne.s32.totalorder %s131, %s134
    %p140 = scmp.eq.s32.totalorder %s11, 0
    %p141 = por %p139, %p140
    %p142 = scmp.ne.s32.totalorder %s131, %s134
    %p143 = scmp.eq.s32.totalorder %s16, 1
    %p144 = por %p142, %p143
    %p145 = scmp.ne.s32.totalorder %s134, %s135
    %p146 = scmp.eq.s32.totalorder %s16, 0
    %p147 = por %p145, %p146
    %p148 = scmp.ne.s32.totalorder %s134, %s135
    %p149 = scmp.eq.s32.totalorder %s17, 1
    %p150 = por %p148, %p149
    %p152 = scmp.ne.s32.totalorder %s135, %s151
    %p153 = scmp.eq.s32.totalorder %s17, 0
    %p154 = por %p152, %p153
    %p155 = scmp.le.s32.totalorder 1, %s11
    %p156 = scmp.lt.s32.totalorder %s11, 3
    %p157 = pnand %p155, %p156
    %p158 = pneg %p157
    // Predicated region
    $region9: #{tpu_custom_call.1} parent=5 // pred_check
      _
    $region10: #{tpu_custom_call.1} parent=5 // pred_check_branch
      %160 = sbr.rel (%p157) target = $region12
    $region11: #{tpu_custom_call.1} parent=5 // pred_region
      %s161 = ssub.s32 %s11, 1
      // Predicated region
      $region13: #{tpu_custom_call.1} parent=11 // pred_check
        %p162 = pneg %p32
      $region14: #{tpu_custom_call.1} parent=11 // pred_check_branch
        %164 = sbr.rel (%p162) target = $region16
      $region15: #{tpu_custom_call.1} parent=11 // pred_region
        _
      $region16: #{tpu_custom_call.1} parent=11 // pred_fallthru
        _
      // Predicated region
      $region17: #{tpu_custom_call.1} parent=11 // pred_check
        %p165 = pneg %p53
      $region18: #{tpu_custom_call.1} parent=11 // pred_check_branch
        %167 = sbr.rel (%p165) target = $region20
      $region19: #{tpu_custom_call.1} parent=11 // pred_region
        _
      $region20: #{tpu_custom_call.1} parent=11 // pred_fallthru
        _
      // Predicated region
      $region21: #{tpu_custom_call.1} parent=11 // pred_check
        %p168 = pneg %p100
      $region22: #{tpu_custom_call.1} parent=11 // pred_check_branch
        %170 = sbr.rel (%p168) target = $region24
      $region23: #{tpu_custom_call.1} parent=11 // pred_region
        _
      $region24: #{tpu_custom_call.1} parent=11 // pred_fallthru
        _
      // Predicated region
      $region25: #{tpu_custom_call.1} parent=11 // pred_check
        %p171 = pneg %p121
      $region26: #{tpu_custom_call.1} parent=11 // pred_check_branch
        %173 = sbr.rel (%p171) target = $region28
      $region27: #{tpu_custom_call.1} parent=11 // pred_region
        _
      $region28: #{tpu_custom_call.1} parent=11 // pred_fallthru
        _
    $region12: #{tpu_custom_call.1} parent=5 // pred_fallthru
      _
    %p174 = scmp.lt.s32.totalorder %s11, 2
    // Predicated region
    $region29: #{tpu_custom_call.1} parent=5 // pred_check
      %p175 = pneg %p174
    $region30: #{tpu_custom_call.1} parent=5 // pred_check_branch
      %177 = sbr.rel (%p175) target = $region32
    $region31: #{tpu_custom_call.1} parent=5 // pred_region
      // Predicated region
      $region33: #{tpu_custom_call.1} parent=31 // pred_check
        %p178 = pneg %p73
      $region34: #{tpu_custom_call.1} parent=31 // pred_check_branch
        %180 = sbr.rel (%p178) target = $region36
      $region35: #{tpu_custom_call.1} parent=31 // pred_region
        %s181 = smul.u32 16, %s11
        %p182 = scmp.lt.s32.totalorder %s181, 31
        %s183 = scalar_select %p182, %s181, 31
        %s184 = smul.addr %s183, 2
        %s185 = smul.addr %s184, 4
        %s186 = scalar_lea.vmem %s2, %s185
        %s187 = smul.u32 16, %s11
      $region36: #{tpu_custom_call.1} parent=31 // pred_fallthru
        _
    $region32: #{tpu_custom_call.1} parent=5 // pred_fallthru
      _
    %p188 = scmp.le.s32.totalorder 1, %s11
    %p189 = scmp.lt.s32.totalorder %s11, 3
    %p190 = pnand %p188, %p189
    %p191 = pneg %p190
    // Predicated region
    $region37: #{tpu_custom_call.1} parent=5 // pred_check
      _
    $region38: #{tpu_custom_call.1} parent=5 // pred_check_branch
      %193 = sbr.rel (%p190) target = $region40
    $region39: #{tpu_custom_call.1} parent=5 // pred_region
      %s194 = ssub.s32 %s11, 1
      %p195 = pneg %p32
      %p196 = pneg %p29
      %p197 = pneg %p53
      %p198 = pneg %p50
      %s199 = smul.u32 16, %s16
      %p200 = scmp.lt.s32.totalorder %s199, 31
      %s201 = scalar_select %p200, %s199, 31
      %s202 = smul.addr %s201, 2
      %s203 = smul.addr %s202, 4
      %s204 = scalar_lea.vmem %s2, %s203
      %p205 = pneg %p79
      %p206 = pneg %p76
      %p207 = pneg %p100
      %p208 = pneg %p97
      %p209 = pneg %p121
      %p210 = pneg %p118
      %p211 = pneg %p147
      %p212 = pneg %p144
      %s213 = smul.u32 16, %s16
      %p214 = scmp.lt.s32.totalorder %s213, 31
      %s215 = scalar_select %p214, %s213, 31
      %s216 = smul.addr %s215, 2
      %s217 = smul.addr %s216, 8
      %s218 = scalar_lea.vmem %s5, %s217
      %s219 = smul.u32 16, %s16
      %p220 = scmp.lt.s32.totalorder %s219, 31
      %s221 = scalar_select %p220, %s219, 31
      %s222 = smul.addr %s221, 2
      %s223 = smul.addr %s222, 4
      %s224 = scalar_lea.vmem %s2, %s223
      %s225 = smul.u32 16, %s16
      %s226 = smul.u32 16, %s16
      %p227 = scmp.lt.s32.totalorder %s226, 31
      %s228 = scalar_select %p227, %s226, 31
      %s229 = smul.addr %s228, 2
      %s230 = smul.addr %s229, 8
      %s231 = scalar_lea.vmem %s5, %s230
      %s232 = smul.u32 16, %s16
      %p233 = scmp.eq.s32.totalorder %s16, 0
      // Predicated region
      $region41: #{tpu_custom_call.1} parent=39 // pred_check
        %p234 = pneg %p233
      $region42: #{tpu_custom_call.1} parent=39 // pred_check_branch
        %236 = sbr.rel (%p234) target = $region44
      $region43: #{tpu_custom_call.1} parent=39 // pred_region
        %v237 = vld [vmem:[%s0] sm:$0xff]
        %v238 = vld [vmem:[%s0 + $0x8] sm:$0xff]
        %v239 = vld [vmem:[%s0 + $0x10] sm:$0xff]
        %v240 = vld [vmem:[%s0 + $0x18] sm:$0xff]
        %v241 = vld [vmem:[%s0 + $0x20] sm:$0xff]
        %v242 = vld [vmem:[%s0 + $0x28] sm:$0xff]
        %v243 = vld [vmem:[%s0 + $0x30] sm:$0xff]
        %v244 = vld [vmem:[%s0 + $0x38] sm:$0xff]
        %v245 = vld [vmem:[%s0 + $0x40] sm:$0xff]
        %v246 = vld [vmem:[%s0 + $0x48] sm:$0xff]
        %v247 = vld [vmem:[%s0 + $0x50] sm:$0xff]
        %v248 = vld [vmem:[%s0 + $0x58] sm:$0xff]
        %v249 = vld [vmem:[%s0 + $0x60] sm:$0xff]
        %v250 = vld [vmem:[%s0 + $0x68] sm:$0xff]
        %v251 = vld [vmem:[%s0 + $0x70] sm:$0xff]
        %v252 = vld [vmem:[%s0 + $0x78] sm:$0xff]
        %v253 = vld [vmem:[%s0 + $0x80] sm:$0xff]
        %v254 = vld [vmem:[%s0 + $0x88] sm:$0xff]
        %v255 = vld [vmem:[%s0 + $0x90] sm:$0xff]
        %v256 = vld [vmem:[%s0 + $0x98] sm:$0xff]
        %v257 = vld [vmem:[%s0 + $0xa0] sm:$0xff]
        %v258 = vld [vmem:[%s0 + $0xa8] sm:$0xff]
        %v259 = vld [vmem:[%s0 + $0xb0] sm:$0xff]
        %v260 = vld [vmem:[%s0 + $0xb8] sm:$0xff]
        %v261 = vld [vmem:[%s0 + $0xc0] sm:$0xff]
        %v262 = vld [vmem:[%s0 + $0xc8] sm:$0xff]
        %v263 = vld [vmem:[%s0 + $0xd0] sm:$0xff]
        %v264 = vld [vmem:[%s0 + $0xd8] sm:$0xff]
        %v265 = vld [vmem:[%s0 + $0xe0] sm:$0xff]
        %v266 = vld [vmem:[%s0 + $0xe8] sm:$0xff]
        %v267 = vld [vmem:[%s0 + $0xf0] sm:$0xff]
        %v268 = vld [vmem:[%s0 + $0xf8] sm:$0xff]
        %v269 = vld [vmem:[%s0 + $0x100] sm:$0xff]
        %v270 = vld [vmem:[%s0 + $0x108] sm:$0xff]
        %v271 = vld [vmem:[%s0 + $0x110] sm:$0xff]
        %v272 = vld [vmem:[%s0 + $0x118] sm:$0xff]
        %v273 = vld [vmem:[%s0 + $0x120] sm:$0xff]
        %v274 = vld [vmem:[%s0 + $0x128] sm:$0xff]
        %v275 = vld [vmem:[%s0 + $0x130] sm:$0xff]
        %v276 = vld [vmem:[%s0 + $0x138] sm:$0xff]
        %v277 = vld [vmem:[%s0 + $0x140] sm:$0xff]
        %v278 = vld [vmem:[%s0 + $0x148] sm:$0xff]
        %v279 = vld [vmem:[%s0 + $0x150] sm:$0xff]
        %v280 = vld [vmem:[%s0 + $0x158] sm:$0xff]
        %v281 = vld [vmem:[%s0 + $0x160] sm:$0xff]
        %v282 = vld [vmem:[%s0 + $0x168] sm:$0xff]
        %v283 = vld [vmem:[%s0 + $0x170] sm:$0xff]
        %v284 = vld [vmem:[%s0 + $0x178] sm:$0xff]
        %v285 = vld [vmem:[%s0 + $0x180] sm:$0xff]
        %v286 = vld [vmem:[%s0 + $0x188] sm:$0xff]
        %v287 = vld [vmem:[%s0 + $0x190] sm:$0xff]
        %v288 = vld [vmem:[%s0 + $0x198] sm:$0xff]
        %v289 = vld [vmem:[%s0 + $0x1a0] sm:$0xff]
        %v290 = vld [vmem:[%s0 + $0x1a8] sm:$0xff]
        %v291 = vld [vmem:[%s0 + $0x1b0] sm:$0xff]
        %v292 = vld [vmem:[%s0 + $0x1b8] sm:$0xff]
        %v293 = vld [vmem:[%s0 + $0x1c0] sm:$0xff]
        %v294 = vld [vmem:[%s0 + $0x1c8] sm:$0xff]
        %v295 = vld [vmem:[%s0 + $0x1d0] sm:$0xff]
        %v296 = vld [vmem:[%s0 + $0x1d8] sm:$0xff]
        %v297 = vld [vmem:[%s0 + $0x1e0] sm:$0xff]
        %v298 = vld [vmem:[%s0 + $0x1e8] sm:$0xff]
        %v299 = vld [vmem:[%s0 + $0x1f0] sm:$0xff]
        %v300 = vld [vmem:[%s0 + $0x1f8] sm:$0xff]
        %v301 = vld [vmem:[%s1] sm:$0xff]
        %v302 = vld [vmem:[%s1 + $0x8] sm:$0xff]
        %v303 = vld [vmem:[%s1 + $0x10] sm:$0xff]
        %v304 = vld [vmem:[%s1 + $0x18] sm:$0xff]
        %v305 = vld [vmem:[%s1 + $0x20] sm:$0xff]
        %v306 = vld [vmem:[%s1 + $0x28] sm:$0xff]
        %v307 = vld [vmem:[%s1 + $0x30] sm:$0xff]
        %v308 = vld [vmem:[%s1 + $0x38] sm:$0xff]
        %v309 = vld [vmem:[%s1 + $0x40] sm:$0xff]
        %v310 = vld [vmem:[%s1 + $0x48] sm:$0xff]
        %v311 = vld [vmem:[%s1 + $0x50] sm:$0xff]
        %v312 = vld [vmem:[%s1 + $0x58] sm:$0xff]
        %v313 = vld [vmem:[%s1 + $0x60] sm:$0xff]
        %v314 = vld [vmem:[%s1 + $0x68] sm:$0xff]
        %v315 = vld [vmem:[%s1 + $0x70] sm:$0xff]
        %v316 = vld [vmem:[%s1 + $0x78] sm:$0xff]
        %v317 = vld [vmem:[%s1 + $0x80] sm:$0xff]
        %v318 = vld [vmem:[%s1 + $0x88] sm:$0xff]
        %v319 = vld [vmem:[%s1 + $0x90] sm:$0xff]
        %v320 = vld [vmem:[%s1 + $0x98] sm:$0xff]
        %v321 = vld [vmem:[%s1 + $0xa0] sm:$0xff]
        %v322 = vld [vmem:[%s1 + $0xa8] sm:$0xff]
        %v323 = vld [vmem:[%s1 + $0xb0] sm:$0xff]
        %v324 = vld [vmem:[%s1 + $0xb8] sm:$0xff]
        %v325 = vld [vmem:[%s1 + $0xc0] sm:$0xff]
        %v326 = vld [vmem:[%s1 + $0xc8] sm:$0xff]
        %v327 = vld [vmem:[%s1 + $0xd0] sm:$0xff]
        %v328 = vld [vmem:[%s1 + $0xd8] sm:$0xff]
        %v329 = vld [vmem:[%s1 + $0xe0] sm:$0xff]
        %v330 = vld [vmem:[%s1 + $0xe8] sm:$0xff]
        %v331 = vld [vmem:[%s1 + $0xf0] sm:$0xff]
        %v332 = vld [vmem:[%s1 + $0xf8] sm:$0xff]
        %v333 = vld [vmem:[%s1 + $0x100] sm:$0xff]
        %v334 = vld [vmem:[%s1 + $0x108] sm:$0xff]
        %v335 = vld [vmem:[%s1 + $0x110] sm:$0xff]
        %v336 = vld [vmem:[%s1 + $0x118] sm:$0xff]
        %v337 = vld [vmem:[%s1 + $0x120] sm:$0xff]
        %v338 = vld [vmem:[%s1 + $0x128] sm:$0xff]
        %v339 = vld [vmem:[%s1 + $0x130] sm:$0xff]
        %v340 = vld [vmem:[%s1 + $0x138] sm:$0xff]
        %v341 = vld [vmem:[%s1 + $0x140] sm:$0xff]
        %v342 = vld [vmem:[%s1 + $0x148] sm:$0xff]
        %v343 = vld [vmem:[%s1 + $0x150] sm:$0xff]
        %v344 = vld [vmem:[%s1 + $0x158] sm:$0xff]
        %v345 = vld [vmem:[%s1 + $0x160] sm:$0xff]
        %v346 = vld [vmem:[%s1 + $0x168] sm:$0xff]
        %v347 = vld [vmem:[%s1 + $0x170] sm:$0xff]
        %v348 = vld [vmem:[%s1 + $0x178] sm:$0xff]
        %v349 = vld [vmem:[%s1 + $0x180] sm:$0xff]
        %v350 = vld [vmem:[%s1 + $0x188] sm:$0xff]
        %v351 = vld [vmem:[%s1 + $0x190] sm:$0xff]
        %v352 = vld [vmem:[%s1 + $0x198] sm:$0xff]
        %v353 = vld [vmem:[%s1 + $0x1a0] sm:$0xff]
        %v354 = vld [vmem:[%s1 + $0x1a8] sm:$0xff]
        %v355 = vld [vmem:[%s1 + $0x1b0] sm:$0xff]
        %v356 = vld [vmem:[%s1 + $0x1b8] sm:$0xff]
        %v357 = vld [vmem:[%s1 + $0x1c0] sm:$0xff]
        %v358 = vld [vmem:[%s1 + $0x1c8] sm:$0xff]
        %v359 = vld [vmem:[%s1 + $0x1d0] sm:$0xff]
        %v360 = vld [vmem:[%s1 + $0x1d8] sm:$0xff]
        %v361 = vld [vmem:[%s1 + $0x1e0] sm:$0xff]
        %v362 = vld [vmem:[%s1 + $0x1e8] sm:$0xff]
        %v363 = vld [vmem:[%s1 + $0x1f0] sm:$0xff]
        %v364 = vld [vmem:[%s1 + $0x1f8] sm:$0xff]
        %v365 = vadd.f32 %v237, %v301
        %v366 = vadd.f32 %v238, %v302
        %v367 = vadd.f32 %v239, %v303
        %v368 = vadd.f32 %v240, %v304
        %v369 = vadd.f32 %v241, %v305
        %v370 = vadd.f32 %v242, %v306
        %v371 = vadd.f32 %v243, %v307
        %v372 = vadd.f32 %v244, %v308
        %v373 = vadd.f32 %v245, %v309
        %v374 = vadd.f32 %v246, %v310
        %v375 = vadd.f32 %v247, %v311
        %v376 = vadd.f32 %v248, %v312
        %v377 = vadd.f32 %v249, %v313
        %v378 = vadd.f32 %v250, %v314
        %v379 = vadd.f32 %v251, %v315
        %v380 = vadd.f32 %v252, %v316
        %v381 = vadd.f32 %v253, %v317
        %v382 = vadd.f32 %v254, %v318
        %v383 = vadd.f32 %v255, %v319
        %v384 = vadd.f32 %v256, %v320
        %v385 = vadd.f32 %v257, %v321
        %v386 = vadd.f32 %v258, %v322
        %v387 = vadd.f32 %v259, %v323
        %v388 = vadd.f32 %v260, %v324
        %v389 = vadd.f32 %v261, %v325
        %v390 = vadd.f32 %v262, %v326
        %v391 = vadd.f32 %v263, %v327
        %v392 = vadd.f32 %v264, %v328
        %v393 = vadd.f32 %v265, %v329
        %v394 = vadd.f32 %v266, %v330
        %v395 = vadd.f32 %v267, %v331
        %v396 = vadd.f32 %v268, %v332
        %v397 = vadd.f32 %v269, %v333
        %v398 = vadd.f32 %v270, %v334
        %v399 = vadd.f32 %v271, %v335
        %v400 = vadd.f32 %v272, %v336
        %v401 = vadd.f32 %v273, %v337
        %v402 = vadd.f32 %v274, %v338
        %v403 = vadd.f32 %v275, %v339
        %v404 = vadd.f32 %v276, %v340
        %v405 = vadd.f32 %v277, %v341
        %v406 = vadd.f32 %v278, %v342
        %v407 = vadd.f32 %v279, %v343
        %v408 = vadd.f32 %v280, %v344
        %v409 = vadd.f32 %v281, %v345
        %v410 = vadd.f32 %v282, %v346
        %v411 = vadd.f32 %v283, %v347
        %v412 = vadd.f32 %v284, %v348
        %v413 = vadd.f32 %v285, %v349
        %v414 = vadd.f32 %v286, %v350
        %v415 = vadd.f32 %v287, %v351
        %v416 = vadd.f32 %v288, %v352
        %v417 = vadd.f32 %v289, %v353
        %v418 = vadd.f32 %v290, %v354
        %v419 = vadd.f32 %v291, %v355
        %v420 = vadd.f32 %v292, %v356
        %v421 = vadd.f32 %v293, %v357
        %v422 = vadd.f32 %v294, %v358
        %v423 = vadd.f32 %v295, %v359
        %v424 = vadd.f32 %v296, %v360
        %v425 = vadd.f32 %v297, %v361
        %v426 = vadd.f32 %v298, %v362
        %v427 = vadd.f32 %v299, %v363
        %v428 = vadd.f32 %v300, %v364
        %v429 = vmax.f32 %v365, 0.0
        %v430 = vmax.f32 %v366, 0.0
        %v431 = vmax.f32 %v367, 0.0
        %v432 = vmax.f32 %v368, 0.0
        %v433 = vmax.f32 %v369, 0.0
        %v434 = vmax.f32 %v370, 0.0
        %v435 = vmax.f32 %v371, 0.0
        %v436 = vmax.f32 %v372, 0.0
        %v437 = vmax.f32 %v373, 0.0
        %v438 = vmax.f32 %v374, 0.0
        %v439 = vmax.f32 %v375, 0.0
        %v440 = vmax.f32 %v376, 0.0
        %v441 = vmax.f32 %v377, 0.0
        %v442 = vmax.f32 %v378, 0.0
        %v443 = vmax.f32 %v379, 0.0
        %v444 = vmax.f32 %v380, 0.0
        %v445 = vmax.f32 %v381, 0.0
        %v446 = vmax.f32 %v382, 0.0
        %v447 = vmax.f32 %v383, 0.0
        %v448 = vmax.f32 %v384, 0.0
        %v449 = vmax.f32 %v385, 0.0
        %v450 = vmax.f32 %v386, 0.0
        %v451 = vmax.f32 %v387, 0.0
        %v452 = vmax.f32 %v388, 0.0
        %v453 = vmax.f32 %v389, 0.0
        %v454 = vmax.f32 %v390, 0.0
        %v455 = vmax.f32 %v391, 0.0
        %v456 = vmax.f32 %v392, 0.0
        %v457 = vmax.f32 %v393, 0.0
        %v458 = vmax.f32 %v394, 0.0
        %v459 = vmax.f32 %v395, 0.0
        %v460 = vmax.f32 %v396, 0.0
        %v461 = vmax.f32 %v397, 0.0
        %v462 = vmax.f32 %v398, 0.0
        %v463 = vmax.f32 %v399, 0.0
        %v464 = vmax.f32 %v400, 0.0
        %v465 = vmax.f32 %v401, 0.0
        %v466 = vmax.f32 %v402, 0.0
        %v467 = vmax.f32 %v403, 0.0
        %v468 = vmax.f32 %v404, 0.0
        %v469 = vmax.f32 %v405, 0.0
        %v470 = vmax.f32 %v406, 0.0
        %v471 = vmax.f32 %v407, 0.0
        %v472 = vmax.f32 %v408, 0.0
        %v473 = vmax.f32 %v409, 0.0
        %v474 = vmax.f32 %v410, 0.0
        %v475 = vmax.f32 %v411, 0.0
        %v476 = vmax.f32 %v412, 0.0
        %v477 = vmax.f32 %v413, 0.0
        %v478 = vmax.f32 %v414, 0.0
        %v479 = vmax.f32 %v415, 0.0
        %v480 = vmax.f32 %v416, 0.0
        %v481 = vmax.f32 %v417, 0.0
        %v482 = vmax.f32 %v418, 0.0
        %v483 = vmax.f32 %v419, 0.0
        %v484 = vmax.f32 %v420, 0.0
        %v485 = vmax.f32 %v421, 0.0
        %v486 = vmax.f32 %v422, 0.0
        %v487 = vmax.f32 %v423, 0.0
        %v488 = vmax.f32 %v424, 0.0
        %v489 = vmax.f32 %v425, 0.0
        %v490 = vmax.f32 %v426, 0.0
        %v491 = vmax.f32 %v427, 0.0
        %v492 = vmax.f32 %v428, 0.0
        %v493 = vpack.c.bf16 %v431, %v429
        %v494 = vpack.c.bf16 %v432, %v430
        %v495 = vpack.c.bf16 %v435, %v433
        %v496 = vpack.c.bf16 %v436, %v434
        %v497 = vpack.c.bf16 %v439, %v437
        %v498 = vpack.c.bf16 %v440, %v438
        %v499 = vpack.c.bf16 %v443, %v441
        %v500 = vpack.c.bf16 %v444, %v442
        %v501 = vpack.c.bf16 %v447, %v445
        %v502 = vpack.c.bf16 %v448, %v446
        %v503 = vpack.c.bf16 %v451, %v449
        %v504 = vpack.c.bf16 %v452, %v450
        %v505 = vpack.c.bf16 %v455, %v453
        %v506 = vpack.c.bf16 %v456, %v454
        %v507 = vpack.c.bf16 %v459, %v457
        %v508 = vpack.c.bf16 %v460, %v458
        %v509 = vpack.c.bf16 %v463, %v461
        %v510 = vpack.c.bf16 %v464, %v462
        %v511 = vpack.c.bf16 %v467, %v465
        %v512 = vpack.c.bf16 %v468, %v466
        %v513 = vpack.c.bf16 %v471, %v469
        %v514 = vpack.c.bf16 %v472, %v470
        %v515 = vpack.c.bf16 %v475, %v473
        %v516 = vpack.c.bf16 %v476, %v474
        %v517 = vpack.c.bf16 %v479, %v477
        %v518 = vpack.c.bf16 %v480, %v478
        %v519 = vpack.c.bf16 %v483, %v481
        %v520 = vpack.c.bf16 %v484, %v482
        %v521 = vpack.c.bf16 %v487, %v485
        %v522 = vpack.c.bf16 %v488, %v486
        %v523 = vpack.c.bf16 %v491, %v489
        %v524 = vpack.c.bf16 %v492, %v490
        %525 = vst [vmem:[#allocation2] sm:$0xff] %v493
        %vm526 = vcmask 556032
        %527 = vst.msk [vmem:[#allocation2 + $0x8] sm:$0xff] %vm526, %v494
        %528 = vst [vmem:[#allocation2 + $0x10] sm:$0xff] %v495
        %529 = vst.msk [vmem:[#allocation2 + $0x18] sm:$0xff] %vm526, %v496
        %530 = vst [vmem:[#allocation2 + $0x20] sm:$0xff] %v497
        %531 = vst.msk [vmem:[#allocation2 + $0x28] sm:$0xff] %vm526, %v498
        %532 = vst [vmem:[#allocation2 + $0x30] sm:$0xff] %v499
        %533 = vst.msk [vmem:[#allocation2 + $0x38] sm:$0xff] %vm526, %v500
        %534 = vst [vmem:[#allocation2 + $0x40] sm:$0xff] %v501
        %535 = vst.msk [vmem:[#allocation2 + $0x48] sm:$0xff] %vm526, %v502
        %536 = vst [vmem:[#allocation2 + $0x50] sm:$0xff] %v503
        %537 = vst.msk [vmem:[#allocation2 + $0x58] sm:$0xff] %vm526, %v504
        %538 = vst [vmem:[#allocation2 + $0x60] sm:$0xff] %v505
        %539 = vst.msk [vmem:[#allocation2 + $0x68] sm:$0xff] %vm526, %v506
        %540 = vst [vmem:[#allocation2 + $0x70] sm:$0xff] %v507
        %541 = vst.msk [vmem:[#allocation2 + $0x78] sm:$0xff] %vm526, %v508
        %542 = vst [vmem:[#allocation2 + $0x80] sm:$0xff] %v509
        %543 = vst.msk [vmem:[#allocation2 + $0x88] sm:$0xff] %vm526, %v510
        %544 = vst [vmem:[#allocation2 + $0x90] sm:$0xff] %v511
        %545 = vst.msk [vmem:[#allocation2 + $0x98] sm:$0xff] %vm526, %v512
        %546 = vst [vmem:[#allocation2 + $0xa0] sm:$0xff] %v513
        %547 = vst.msk [vmem:[#allocation2 + $0xa8] sm:$0xff] %vm526, %v514
        %548 = vst [vmem:[#allocation2 + $0xb0] sm:$0xff] %v515
        %549 = vst.msk [vmem:[#allocation2 + $0xb8] sm:$0xff] %vm526, %v516
        %550 = vst [vmem:[#allocation2 + $0xc0] sm:$0xff] %v517
        %551 = vst.msk [vmem:[#allocation2 + $0xc8] sm:$0xff] %vm526, %v518
        %552 = vst [vmem:[#allocation2 + $0xd0] sm:$0xff] %v519
        %553 = vst.msk [vmem:[#allocation2 + $0xd8] sm:$0xff] %vm526, %v520
        %554 = vst [vmem:[#allocation2 + $0xe0] sm:$0xff] %v521
        %555 = vst.msk [vmem:[#allocation2 + $0xe8] sm:$0xff] %vm526, %v522
        %556 = vst [vmem:[#allocation2 + $0xf0] sm:$0xff] %v523
        %557 = vst.msk [vmem:[#allocation2 + $0xf8] sm:$0xff] %vm526, %v524
      $region44: #{tpu_custom_call.1} parent=39 // pred_fallthru
        _
      %v558 = vld [vmem:[%s224] sm:$0xff]
      %v559 = vld [vmem:[%s224 + $0x8] sm:$0xff]
      %v560 = vld [vmem:[%s224 + $0x10] sm:$0xff]
      %v561 = vld [vmem:[%s224 + $0x18] sm:$0xff]
      %v562 = vld [vmem:[%s224 + $0x20] sm:$0xff]
      %v563 = vld [vmem:[%s224 + $0x28] sm:$0xff]
      %v564 = vld [vmem:[%s224 + $0x30] sm:$0xff]
      %v565 = vld [vmem:[%s224 + $0x38] sm:$0xff]
      %v566 = vld [vmem:[%s224 + $0x40] sm:$0xff]
      %v567 = vld [vmem:[%s224 + $0x48] sm:$0xff]
      %v568 = vld [vmem:[%s224 + $0x50] sm:$0xff]
      %v569 = vld [vmem:[%s224 + $0x58] sm:$0xff]
      %v570 = vld [vmem:[%s224 + $0x60] sm:$0xff]
      %v571 = vld [vmem:[%s224 + $0x68] sm:$0xff]
      %v572 = vld [vmem:[%s224 + $0x70] sm:$0xff]
      %v573 = vld [vmem:[%s224 + $0x78] sm:$0xff]
      %v574 = vld [vmem:[#allocation2] sm:$0xff]
      %v575 = vld [vmem:[#allocation2 + $0x8] sm:$0xff]
      %v576 = vld [vmem:[#allocation2 + $0x10] sm:$0xff]
      %v577 = vld [vmem:[#allocation2 + $0x18] sm:$0xff]
      %v578 = vld [vmem:[#allocation2 + $0x20] sm:$0xff]
      %v579 = vld [vmem:[#allocation2 + $0x28] sm:$0xff]
      %v580 = vld [vmem:[#allocation2 + $0x30] sm:$0xff]
      %v581 = vld [vmem:[#allocation2 + $0x38] sm:$0xff]
      %v582 = vld [vmem:[#allocation2 + $0x40] sm:$0xff]
      %v583 = vld [vmem:[#allocation2 + $0x48] sm:$0xff]
      %v584 = vld [vmem:[#allocation2 + $0x50] sm:$0xff]
      %v585 = vld [vmem:[#allocation2 + $0x58] sm:$0xff]
      %v586 = vld [vmem:[#allocation2 + $0x60] sm:$0xff]
      %v587 = vld [vmem:[#allocation2 + $0x68] sm:$0xff]
      %v588 = vld [vmem:[#allocation2 + $0x70] sm:$0xff]
      %v589 = vld [vmem:[#allocation2 + $0x78] sm:$0xff]
      %v590 = vld [vmem:[#allocation2 + $0x80] sm:$0xff]
      %v591 = vld [vmem:[#allocation2 + $0x88] sm:$0xff]
      %v592 = vld [vmem:[#allocation2 + $0x90] sm:$0xff]
      %v593 = vld [vmem:[#allocation2 + $0x98] sm:$0xff]
      %v594 = vld [vmem:[#allocation2 + $0xa0] sm:$0xff]
      %v595 = vld [vmem:[#allocation2 + $0xa8] sm:$0xff]
      %v596 = vld [vmem:[#allocation2 + $0xb0] sm:$0xff]
      %v597 = vld [vmem:[#allocation2 + $0xb8] sm:$0xff]
      %v598 = vld [vmem:[#allocation2 + $0xc0] sm:$0xff]
      %v599 = vld [vmem:[#allocation2 + $0xc8] sm:$0xff]
      %v600 = vld [vmem:[#allocation2 + $0xd0] sm:$0xff]
      %v601 = vld [vmem:[#allocation2 + $0xd8] sm:$0xff]
      %v602 = vld [vmem:[#allocation2 + $0xe0] sm:$0xff]
      %v603 = vld [vmem:[#allocation2 + $0xe8] sm:$0xff]
      %v604 = vld [vmem:[#allocation2 + $0xf0] sm:$0xff]
      %v605 = vld [vmem:[#allocation2 + $0xf8] sm:$0xff]
      %v622 = vunpack.c.l.b16 %v558
      %v623 = vunpack.c.h.b16 %v558
      %v624 = vunpack.c.l.b16 %v559
      %v625 = vunpack.c.h.b16 %v559
      %v626 = vunpack.c.l.b16 %v560
      %v627 = vunpack.c.h.b16 %v560
      %v628 = vunpack.c.l.b16 %v561
      %v629 = vunpack.c.h.b16 %v561
      %v630 = vunpack.c.l.b16 %v562
      %v631 = vunpack.c.h.b16 %v562
      %v632 = vunpack.c.l.b16 %v563
      %v633 = vunpack.c.h.b16 %v563
      %v634 = vunpack.c.l.b16 %v564
      %v635 = vunpack.c.h.b16 %v564
      %v636 = vunpack.c.l.b16 %v565
      %v637 = vunpack.c.h.b16 %v565
      %v638 = vunpack.c.l.b16 %v566
      %v639 = vunpack.c.h.b16 %v566
      %v640 = vunpack.c.l.b16 %v567
      %v641 = vunpack.c.h.b16 %v567
      %v642 = vunpack.c.l.b16 %v568
      %v643 = vunpack.c.h.b16 %v568
      %v644 = vunpack.c.l.b16 %v569
      %v645 = vunpack.c.h.b16 %v569
      %v646 = vunpack.c.l.b16 %v570
      %v647 = vunpack.c.h.b16 %v570
      %v648 = vunpack.c.l.b16 %v571
      %v649 = vunpack.c.h.b16 %v571
      %v650 = vunpack.c.l.b16 %v572
      %v651 = vunpack.c.h.b16 %v572
      %v652 = vunpack.c.l.b16 %v573
      %v653 = vunpack.c.h.b16 %v573
      %v654 = vpack.c.b16 %v624, %v622
      %v655 = vpack.c.b16 %v625, %v623
      %v656 = vpack.c.b16 %v628, %v626
      %v657 = vpack.c.b16 %v629, %v627
      %v658 = vpack.c.b16 %v632, %v630
      %v659 = vpack.c.b16 %v633, %v631
      %v660 = vpack.c.b16 %v636, %v634
      %v661 = vpack.c.b16 %v637, %v635
      %v662 = vpack.c.b16 %v640, %v638
      %v663 = vpack.c.b16 %v641, %v639
      %v664 = vpack.c.b16 %v644, %v642
      %v665 = vpack.c.b16 %v645, %v643
      %v666 = vpack.c.b16 %v648, %v646
      %v667 = vpack.c.b16 %v649, %v647
      %v668 = vpack.c.b16 %v652, %v650
      %v669 = vpack.c.b16 %v653, %v651
      %686 = vmatprep.subr.bf16.mxu0 %v575
      %687 = vmatpush1.bf16.msra.mxu0 %v574
      %688 = vmatprep.subr.bf16.mxu0 %v577
      %689 = vmatpush1.bf16.msra.mxu0 %v576
      %690 = vmatprep.subr.bf16.mxu0 %v579
      %691 = vmatpush1.bf16.msra.mxu0 %v578
      %692 = vmatprep.subr.bf16.mxu0 %v581
      %693 = vmatpush1.bf16.msra.mxu0 %v580
      %694 = vmatprep.subr.bf16.mxu0 %v583
      %695 = vmatpush1.bf16.msra.mxu0 %v582
      %696 = vmatprep.subr.bf16.mxu0 %v585
      %697 = vmatpush1.bf16.msra.mxu0 %v584
      %698 = vmatprep.subr.bf16.mxu0 %v587
      %699 = vmatpush1.bf16.msra.mxu0 %v586
      %700 = vmatprep.subr.bf16.mxu0 %v589
      %701 = vmatpush1.bf16.msra.mxu0 %v588
      %702 = vmatprep.subr.bf16.mxu0 %v591
      %703 = vmatpush1.bf16.msra.mxu0 %v590
      %704 = vmatprep.subr.bf16.mxu0 %v593
      %705 = vmatpush1.bf16.msra.mxu0 %v592
      %706 = vmatprep.subr.bf16.mxu0 %v595
      %707 = vmatpush1.bf16.msra.mxu0 %v594
      %708 = vmatprep.subr.bf16.mxu0 %v597
      %709 = vmatpush1.bf16.msra.mxu0 %v596
      %710 = vmatprep.subr.bf16.mxu0 %v599
      %711 = vmatpush1.bf16.msra.mxu0 %v598
      %712 = vmatprep.subr.bf16.mxu0 %v601
      %713 = vmatpush1.bf16.msra.mxu0 %v600
      %714 = vmatprep.subr.bf16.mxu0 %v603
      %715 = vmatpush1.bf16.msra.mxu0 %v602
      %716 = vmatprep.subr.bf16.mxu0 %v605
      %717 = vmatpush1.bf16.msra.mxu0 %v604
      %718 = vmatprep.mubr.bf16.mxu0 %v655
      %719 = vmatmul.mubr.bf16.gmra.mrb[0].mxu0 %v654
      %v720 = vpop.f32.mrb[0].mxu0
      %v721 = vadd.f32 0.0, %v720
      %v722 = vpop.f32.mrb[0].mxu0
      %v723 = vadd.f32 0.0, %v722
      %v724 = vpop.f32.mrb[0].mxu0
      %v725 = vadd.f32 0.0, %v724
      %v726 = vpop.f32.mrb[0].mxu0
      %v727 = vadd.f32 0.0, %v726
      %728 = vmatprep.mubr.bf16.mxu0 %v657
      %729 = vmatmul.mubr.bf16.gmra.mrb[0].mxu0 %v656
      %v730 = vpop.f32.mrb[0].mxu0
      %v731 = vadd.f32 0.0, %v730
      %v732 = vpop.f32.mrb[0].mxu0
      %v733 = vadd.f32 0.0, %v732
      %v734 = vpop.f32.mrb[0].mxu0
      %v735 = vadd.f32 0.0, %v734
      %v736 = vpop.f32.mrb[0].mxu0
      %v737 = vadd.f32 0.0, %v736
      %738 = vmatprep.mubr.bf16.mxu0 %v659
      %739 = vmatmul.mubr.bf16.gmra.mrb[0].mxu0 %v658
      %v740 = vpop.f32.mrb[0].mxu0
      %v741 = vadd.f32 0.0, %v740
      %v742 = vpop.f32.mrb[0].mxu0
      %v743 = vadd.f32 0.0, %v742
      %v744 = vpop.f32.mrb[0].mxu0
      %v745 = vadd.f32 0.0, %v744
      %v746 = vpop.f32.mrb[0].mxu0
      %v747 = vadd.f32 0.0, %v746
      %748 = vmatprep.mubr.bf16.mxu0 %v661
      %749 = vmatmul.mubr.bf16.gmra.mrb[0].mxu0 %v660
      %v750 = vpop.f32.mrb[0].mxu0
      %v751 = vadd.f32 0.0, %v750
      %v752 = vpop.f32.mrb[0].mxu0
      %v753 = vadd.f32 0.0, %v752
      %v754 = vpop.f32.mrb[0].mxu0
      %v755 = vadd.f32 0.0, %v754
      %v756 = vpop.f32.mrb[0].mxu0
      %v757 = vadd.f32 0.0, %v756
      %758 = vmatprep.mubr.bf16.mxu0 %v663
      %759 = vmatmul.mubr.bf16.gmra.mrb[0].mxu0 %v662
      %v760 = vpop.f32.mrb[0].mxu0
      %v761 = vadd.f32 0.0, %v760
      %v762 = vpop.f32.mrb[0].mxu0
      %v763 = vadd.f32 0.0, %v762
      %v764 = vpop.f32.mrb[0].mxu0
      %v765 = vadd.f32 0.0, %v764
      %v766 = vpop.f32.mrb[0].mxu0
      %v767 = vadd.f32 0.0, %v766
      %768 = vmatprep.mubr.bf16.mxu0 %v665
      %769 = vmatmul.mubr.bf16.gmra.mrb[0].mxu0 %v664
      %v770 = vpop.f32.mrb[0].mxu0
      %v771 = vadd.f32 0.0, %v770
      %v772 = vpop.f32.mrb[0].mxu0
      %v773 = vadd.f32 0.0, %v772
      %v774 = vpop.f32.mrb[0].mxu0
      %v775 = vadd.f32 0.0, %v774
      %v776 = vpop.f32.mrb[0].mxu0
      %v777 = vadd.f32 0.0, %v776
      %778 = vmatprep.mubr.bf16.mxu0 %v667
      %779 = vmatmul.mubr.bf16.gmra.mrb[0].mxu0 %v666
      %v780 = vpop.f32.mrb[0].mxu0
      %v781 = vadd.f32 0.0, %v780
      %v782 = vpop.f32.mrb[0].mxu0
      %v783 = vadd.f32 0.0, %v782
      %v784 = vpop.f32.mrb[0].mxu0
      %v785 = vadd.f32 0.0, %v784
      %v786 = vpop.f32.mrb[0].mxu0
      %v787 = vadd.f32 0.0, %v786
      %788 = vmatprep.mubr.bf16.mxu0 %v669
      %789 = vmatmul.mubr.bf16.gmra.mrb[0].mxu0 %v668
      %v790 = vpop.f32.mrb[0].mxu0
      %v791 = vadd.f32 0.0, %v790
      %v792 = vpop.f32.mrb[0].mxu0
      %v793 = vadd.f32 0.0, %v792
      %v794 = vpop.f32.mrb[0].mxu0
      %v795 = vadd.f32 0.0, %v794
      %v796 = vpop.f32.mrb[0].mxu0
      %v797 = vadd.f32 0.0, %v796
      %798 = vdwg.mxu0
      %vm799 = vcmask 556032
      %v800 = vsel %vm799, %v723, 0.0
      %v801 = vadd.f32 %v721, %v800
      %802 = vadd.xlane.f32.xlu0 %v801
      %v803 = vpop.xlane.xlu0 %802
      %v804 = vsel %vm799, %v727, 0.0
      %v805 = vadd.f32 %v725, %v804
      %806 = vadd.xlane.f32.xlu0 %v805
      %v807 = vpop.xlane.xlu0 %806
      %v808 = vsel %vm799, %v733, 0.0
      %v809 = vadd.f32 %v731, %v808
      %810 = vadd.xlane.f32.xlu0 %v809
      %v811 = vpop.xlane.xlu0 %810
      %v812 = vsel %vm799, %v737, 0.0
      %v813 = vadd.f32 %v735, %v812
      %814 = vadd.xlane.f32.xlu0 %v813
      %v815 = vpop.xlane.xlu0 %814
      %v816 = vsel %vm799, %v743, 0.0
      %v817 = vadd.f32 %v741, %v816
      %818 = vadd.xlane.f32.xlu0 %v817
      %v819 = vpop.xlane.xlu0 %818
      %v820 = vsel %vm799, %v747, 0.0
      %v821 = vadd.f32 %v745, %v820
      %822 = vadd.xlane.f32.xlu0 %v821
      %v823 = vpop.xlane.xlu0 %822
      %v824 = vsel %vm799, %v753, 0.0
      %v825 = vadd.f32 %v751, %v824
      %826 = vadd.xlane.f32.xlu0 %v825
      %v827 = vpop.xlane.xlu0 %826
      %v828 = vsel %vm799, %v757, 0.0
      %v829 = vadd.f32 %v755, %v828
      %830 = vadd.xlane.f32.xlu0 %v829
      %v831 = vpop.xlane.xlu0 %830
      %v832 = vsel %vm799, %v763, 0.0
      %v833 = vadd.f32 %v761, %v832
      %834 = vadd.xlane.f32.xlu0 %v833
      %v835 = vpop.xlane.xlu0 %834
      %v836 = vsel %vm799, %v767, 0.0
      %v837 = vadd.f32 %v765, %v836
      %838 = vadd.xlane.f32.xlu0 %v837
      %v839 = vpop.xlane.xlu0 %838
      %v840 = vsel %vm799, %v773, 0.0
      %v841 = vadd.f32 %v771, %v840
      %842 = vadd.xlane.f32.xlu0 %v841
      %v843 = vpop.xlane.xlu0 %842
      %v844 = vsel %vm799, %v777, 0.0
      %v845 = vadd.f32 %v775, %v844
      %846 = vadd.xlane.f32.xlu0 %v845
      %v847 = vpop.xlane.xlu0 %846
      %v848 = vsel %vm799, %v783, 0.0
      %v849 = vadd.f32 %v781, %v848
      %850 = vadd.xlane.f32.xlu0 %v849
      %v851 = vpop.xlane.xlu0 %850
      %v852 = vsel %vm799, %v787, 0.0
      %v853 = vadd.f32 %v785, %v852
      %854 = vadd.xlane.f32.xlu0 %v853
      %v855 = vpop.xlane.xlu0 %854
      %v856 = vsel %vm799, %v793, 0.0
      %v857 = vadd.f32 %v791, %v856
      %858 = vadd.xlane.f32.xlu0 %v857
      %v859 = vpop.xlane.xlu0 %858
      %v860 = vsel %vm799, %v797, 0.0
      %v861 = vadd.f32 %v795, %v860
      %862 = vadd.xlane.f32.xlu0 %v861
      %v863 = vpop.xlane.xlu0 %862
      %v864 = vmul.f32 %v721, %v721
      %v865 = vmul.f32 %v723, %v723
      %v866 = vmul.f32 %v725, %v725
      %v867 = vmul.f32 %v727, %v727
      %v868 = vmul.f32 %v731, %v731
      %v869 = vmul.f32 %v733, %v733
      %v870 = vmul.f32 %v735, %v735
      %v871 = vmul.f32 %v737, %v737
      %v872 = vmul.f32 %v741, %v741
      %v873 = vmul.f32 %v743, %v743
      %v874 = vmul.f32 %v745, %v745
      %v875 = vmul.f32 %v747, %v747
      %v876 = vmul.f32 %v751, %v751
      %v877 = vmul.f32 %v753, %v753
      %v878 = vmul.f32 %v755, %v755
      %v879 = vmul.f32 %v757, %v757
      %v880 = vmul.f32 %v761, %v761
      %v881 = vmul.f32 %v763, %v763
      %v882 = vmul.f32 %v765, %v765
      %v883 = vmul.f32 %v767, %v767
      %v884 = vmul.f32 %v771, %v771
      %v885 = vmul.f32 %v773, %v773
      %v886 = vmul.f32 %v775, %v775
      %v887 = vmul.f32 %v777, %v777
      %v888 = vmul.f32 %v781, %v781
      %v889 = vmul.f32 %v783, %v783
      %v890 = vmul.f32 %v785, %v785
      %v891 = vmul.f32 %v787, %v787
      %v892 = vmul.f32 %v791, %v791
      %v893 = vmul.f32 %v793, %v793
      %v894 = vmul.f32 %v795, %v795
      %v895 = vmul.f32 %v797, %v797
      %v896 = vsel %vm799, %v865, 0.0
      %v897 = vadd.f32 %v864, %v896
      %898 = vadd.xlane.f32.xlu0 %v897
      %v899 = vpop.xlane.xlu0 %898
      %v900 = vsel %vm799, %v867, 0.0
      %v901 = vadd.f32 %v866, %v900
      %902 = vadd.xlane.f32.xlu0 %v901
      %v903 = vpop.xlane.xlu0 %902
      %v904 = vsel %vm799, %v869, 0.0
      %v905 = vadd.f32 %v868, %v904
      %906 = vadd.xlane.f32.xlu0 %v905
      %v907 = vpop.xlane.xlu0 %906
      %v908 = vsel %vm799, %v871, 0.0
      %v909 = vadd.f32 %v870, %v908
      %910 = vadd.xlane.f32.xlu0 %v909
      %v911 = vpop.xlane.xlu0 %910
      %v912 = vsel %vm799, %v873, 0.0
      %v913 = vadd.f32 %v872, %v912
      %914 = vadd.xlane.f32.xlu0 %v913
      %v915 = vpop.xlane.xlu0 %914
      %v916 = vsel %vm799, %v875, 0.0
      %v917 = vadd.f32 %v874, %v916
      %918 = vadd.xlane.f32.xlu0 %v917
      %v919 = vpop.xlane.xlu0 %918
      %v920 = vsel %vm799, %v877, 0.0
      %v921 = vadd.f32 %v876, %v920
      %922 = vadd.xlane.f32.xlu0 %v921
      %v923 = vpop.xlane.xlu0 %922
      %v924 = vsel %vm799, %v879, 0.0
      %v925 = vadd.f32 %v878, %v924
      %926 = vadd.xlane.f32.xlu0 %v925
      %v927 = vpop.xlane.xlu0 %926
      %v928 = vsel %vm799, %v881, 0.0
      %v929 = vadd.f32 %v880, %v928
      %930 = vadd.xlane.f32.xlu0 %v929
      %v931 = vpop.xlane.xlu0 %930
      %v932 = vsel %vm799, %v883, 0.0
      %v933 = vadd.f32 %v882, %v932
      %934 = vadd.xlane.f32.xlu0 %v933
      %v935 = vpop.xlane.xlu0 %934
      %v936 = vsel %vm799, %v885, 0.0
      %v937 = vadd.f32 %v884, %v936
      %938 = vadd.xlane.f32.xlu0 %v937
      %v939 = vpop.xlane.xlu0 %938
      %v940 = vsel %vm799, %v887, 0.0
      %v941 = vadd.f32 %v886, %v940
      %942 = vadd.xlane.f32.xlu0 %v941
      %v943 = vpop.xlane.xlu0 %942
      %v944 = vsel %vm799, %v889, 0.0
      %v945 = vadd.f32 %v888, %v944
      %946 = vadd.xlane.f32.xlu0 %v945
      %v947 = vpop.xlane.xlu0 %946
      %v948 = vsel %vm799, %v891, 0.0
      %v949 = vadd.f32 %v890, %v948
      %950 = vadd.xlane.f32.xlu0 %v949
      %v951 = vpop.xlane.xlu0 %950
      %v952 = vsel %vm799, %v893, 0.0
      %v953 = vadd.f32 %v892, %v952
      %954 = vadd.xlane.f32.xlu0 %v953
      %v955 = vpop.xlane.xlu0 %954
      %v956 = vsel %vm799, %v895, 0.0
      %v957 = vadd.f32 %v894, %v956
      %958 = vadd.xlane.f32.xlu0 %v957
      %v959 = vpop.xlane.xlu0 %958
      %v960 = vmul.f32 %v803, 0.0051020407
      %v961 = vmul.f32 %v807, 0.0051020407
      %v962 = vmul.f32 %v811, 0.0051020407
      %v963 = vmul.f32 %v815, 0.0051020407
      %v964 = vmul.f32 %v819, 0.0051020407
      %v965 = vmul.f32 %v823, 0.0051020407
      %v966 = vmul.f32 %v827, 0.0051020407
      %v967 = vmul.f32 %v831, 0.0051020407
      %v968 = vmul.f32 %v835, 0.0051020407
      %v969 = vmul.f32 %v839, 0.0051020407
      %v970 = vmul.f32 %v843, 0.0051020407
      %v971 = vmul.f32 %v847, 0.0051020407
      %v972 = vmul.f32 %v851, 0.0051020407
      %v973 = vmul.f32 %v855, 0.0051020407
      %v974 = vmul.f32 %v859, 0.0051020407
      %v975 = vmul.f32 %v863, 0.0051020407
      %v976 = vmul.f32 %v899, 0.0051020407
      %v977 = vmul.f32 %v903, 0.0051020407
      %v978 = vmul.f32 %v907, 0.0051020407
      %v979 = vmul.f32 %v911, 0.0051020407
      %v980 = vmul.f32 %v915, 0.0051020407
      %v981 = vmul.f32 %v919, 0.0051020407
      %v982 = vmul.f32 %v923, 0.0051020407
      %v983 = vmul.f32 %v927, 0.0051020407
      %v984 = vmul.f32 %v931, 0.0051020407
      %v985 = vmul.f32 %v935, 0.0051020407
      %v986 = vmul.f32 %v939, 0.0051020407
      %v987 = vmul.f32 %v943, 0.0051020407
      %v988 = vmul.f32 %v947, 0.0051020407
      %v989 = vmul.f32 %v951, 0.0051020407
      %v990 = vmul.f32 %v955, 0.0051020407
      %v991 = vmul.f32 %v959, 0.0051020407
      %v992 = vmul.f32 %v960, %v960
      %v993 = vmul.f32 %v961, %v961
      %v994 = vmul.f32 %v962, %v962
      %v995 = vmul.f32 %v963, %v963
      %v996 = vmul.f32 %v964, %v964
      %v997 = vmul.f32 %v965, %v965
      %v998 = vmul.f32 %v966, %v966
      %v999 = vmul.f32 %v967, %v967
      %v1000 = vmul.f32 %v968, %v968
      %v1001 = vmul.f32 %v969, %v969
      %v1002 = vmul.f32 %v970, %v970
      %v1003 = vmul.f32 %v971, %v971
      %v1004 = vmul.f32 %v972, %v972
      %v1005 = vmul.f32 %v973, %v973
      %v1006 = vmul.f32 %v974, %v974
      %v1007 = vmul.f32 %v975, %v975
      %v1008 = vsub.f32 %v976, %v992
      %v1009 = vsub.f32 %v977, %v993
      %v1010 = vsub.f32 %v978, %v994
      %v1011 = vsub.f32 %v979, %v995
      %v1012 = vsub.f32 %v980, %v996
      %v1013 = vsub.f32 %v981, %v997
      %v1014 = vsub.f32 %v982, %v998
      %v1015 = vsub.f32 %v983, %v999
      %v1016 = vsub.f32 %v984, %v1000
      %v1017 = vsub.f32 %v985, %v1001
      %v1018 = vsub.f32 %v986, %v1002
      %v1019 = vsub.f32 %v987, %v1003
      %v1020 = vsub.f32 %v988, %v1004
      %v1021 = vsub.f32 %v989, %v1005
      %v1022 = vsub.f32 %v990, %v1006
      %v1023 = vsub.f32 %v991, %v1007
      %v1024 = vadd.f32 %v1008, 1e-05
      %v1025 = vadd.f32 %v1009, 1e-05
      %v1026 = vadd.f32 %v1010, 1e-05
      %v1027 = vadd.f32 %v1011, 1e-05
      %v1028 = vadd.f32 %v1012, 1e-05
      %v1029 = vadd.f32 %v1013, 1e-05
      %v1030 = vadd.f32 %v1014, 1e-05
      %v1031 = vadd.f32 %v1015, 1e-05
      %v1032 = vadd.f32 %v1016, 1e-05
      %v1033 = vadd.f32 %v1017, 1e-05
      %v1034 = vadd.f32 %v1018, 1e-05
      %v1035 = vadd.f32 %v1019, 1e-05
      %v1036 = vadd.f32 %v1020, 1e-05
      %v1037 = vadd.f32 %v1021, 1e-05
      %v1038 = vadd.f32 %v1022, 1e-05
      %v1039 = vadd.f32 %v1023, 1e-05
      %v1040 = vrsqrt.pop %v1024
      %v1041 = vrsqrt.pop %v1025
      %v1042 = vrsqrt.pop %v1026
      %v1043 = vrsqrt.pop %v1027
      %v1044 = vrsqrt.pop %v1028
      %v1045 = vrsqrt.pop %v1029
      %v1046 = vrsqrt.pop %v1030
      %v1047 = vrsqrt.pop %v1031
      %v1048 = vrsqrt.pop %v1032
      %v1049 = vrsqrt.pop %v1033
      %v1050 = vrsqrt.pop %v1034
      %v1051 = vrsqrt.pop %v1035
      %v1052 = vrsqrt.pop %v1036
      %v1053 = vrsqrt.pop %v1037
      %v1054 = vrsqrt.pop %v1038
      %v1055 = vrsqrt.pop %v1039
      %s1056 = smul.u32 %s16, 128
      %s1057 = scalar_lea.vmem %s3, %s1056
      %v1058 = vld [vmem:[%s1057] sm:$0xff]
      %v1059 = vld [vmem:[%s1057 + $0x8] sm:$0xff]
      %v1060 = vld [vmem:[%s1057 + $0x10] sm:$0xff]
      %v1061 = vld [vmem:[%s1057 + $0x18] sm:$0xff]
      %v1062 = vld [vmem:[%s1057 + $0x20] sm:$0xff]
      %v1063 = vld [vmem:[%s1057 + $0x28] sm:$0xff]
      %v1064 = vld [vmem:[%s1057 + $0x30] sm:$0xff]
      %v1065 = vld [vmem:[%s1057 + $0x38] sm:$0xff]
      %v1066 = vld [vmem:[%s1057 + $0x40] sm:$0xff]
      %v1067 = vld [vmem:[%s1057 + $0x48] sm:$0xff]
      %v1068 = vld [vmem:[%s1057 + $0x50] sm:$0xff]
      %v1069 = vld [vmem:[%s1057 + $0x58] sm:$0xff]
      %v1070 = vld [vmem:[%s1057 + $0x60] sm:$0xff]
      %v1071 = vld [vmem:[%s1057 + $0x68] sm:$0xff]
      %v1072 = vld [vmem:[%s1057 + $0x70] sm:$0xff]
      %v1073 = vld [vmem:[%s1057 + $0x78] sm:$0xff]
      %s1074 = scalar_lea.vmem %s4, %s1056
      %v1075 = vld [vmem:[%s1074] sm:$0xff]
      %v1076 = vld [vmem:[%s1074 + $0x8] sm:$0xff]
      %v1077 = vld [vmem:[%s1074 + $0x10] sm:$0xff]
      %v1078 = vld [vmem:[%s1074 + $0x18] sm:$0xff]
      %v1079 = vld [vmem:[%s1074 + $0x20] sm:$0xff]
      %v1080 = vld [vmem:[%s1074 + $0x28] sm:$0xff]
      %v1081 = vld [vmem:[%s1074 + $0x30] sm:$0xff]
      %v1082 = vld [vmem:[%s1074 + $0x38] sm:$0xff]
      %v1083 = vld [vmem:[%s1074 + $0x40] sm:$0xff]
      %v1084 = vld [vmem:[%s1074 + $0x48] sm:$0xff]
      %v1085 = vld [vmem:[%s1074 + $0x50] sm:$0xff]
      %v1086 = vld [vmem:[%s1074 + $0x58] sm:$0xff]
      %v1087 = vld [vmem:[%s1074 + $0x60] sm:$0xff]
      %v1088 = vld [vmem:[%s1074 + $0x68] sm:$0xff]
      %v1089 = vld [vmem:[%s1074 + $0x70] sm:$0xff]
      %v1090 = vld [vmem:[%s1074 + $0x78] sm:$0xff]
      %v1091 = vmul.f32 %v1058, %v1040
      %v1092 = vmul.f32 %v1059, %v1041
      %v1093 = vmul.f32 %v1060, %v1042
      %v1094 = vmul.f32 %v1061, %v1043
      %v1095 = vmul.f32 %v1062, %v1044
      %v1096 = vmul.f32 %v1063, %v1045
      %v1097 = vmul.f32 %v1064, %v1046
      %v1098 = vmul.f32 %v1065, %v1047
      %v1099 = vmul.f32 %v1066, %v1048
      %v1100 = vmul.f32 %v1067, %v1049
      %v1101 = vmul.f32 %v1068, %v1050
      %v1102 = vmul.f32 %v1069, %v1051
      %v1103 = vmul.f32 %v1070, %v1052
      %v1104 = vmul.f32 %v1071, %v1053
      %v1105 = vmul.f32 %v1072, %v1054
      %v1106 = vmul.f32 %v1073, %v1055
      %v1107 = vmul.f32 %v960, %v1091
      %v1108 = vmul.f32 %v961, %v1092
      %v1109 = vmul.f32 %v962, %v1093
      %v1110 = vmul.f32 %v963, %v1094
      %v1111 = vmul.f32 %v964, %v1095
      %v1112 = vmul.f32 %v965, %v1096
      %v1113 = vmul.f32 %v966, %v1097
      %v1114 = vmul.f32 %v967, %v1098
      %v1115 = vmul.f32 %v968, %v1099
      %v1116 = vmul.f32 %v969, %v1100
      %v1117 = vmul.f32 %v970, %v1101
      %v1118 = vmul.f32 %v971, %v1102
      %v1119 = vmul.f32 %v972, %v1103
      %v1120 = vmul.f32 %v973, %v1104
      %v1121 = vmul.f32 %v974, %v1105
      %v1122 = vmul.f32 %v975, %v1106
      %v1123 = vsub.f32 %v1075, %v1107
      %v1124 = vsub.f32 %v1076, %v1108
      %v1125 = vsub.f32 %v1077, %v1109
      %v1126 = vsub.f32 %v1078, %v1110
      %v1127 = vsub.f32 %v1079, %v1111
      %v1128 = vsub.f32 %v1080, %v1112
      %v1129 = vsub.f32 %v1081, %v1113
      %v1130 = vsub.f32 %v1082, %v1114
      %v1131 = vsub.f32 %v1083, %v1115
      %v1132 = vsub.f32 %v1084, %v1116
      %v1133 = vsub.f32 %v1085, %v1117
      %v1134 = vsub.f32 %v1086, %v1118
      %v1135 = vsub.f32 %v1087, %v1119
      %v1136 = vsub.f32 %v1088, %v1120
      %v1137 = vsub.f32 %v1089, %v1121
      %v1138 = vsub.f32 %v1090, %v1122
      %1140 = vset.pattern.permute.xlu0 0
      %1141 = vperm.xlu0 %1140, %v1091
      %v1142 = vpop.permute.xlu0 %1141
      %1145 = vset.pattern.permute.xlu0 0
      %1146 = vperm.xlu0 %1145, %v1092
      %v1147 = vpop.permute.xlu0 %1146
      %1150 = vset.pattern.permute.xlu0 0
      %1151 = vperm.xlu0 %1150, %v1093
      %v1152 = vpop.permute.xlu0 %1151
      %1155 = vset.pattern.permute.xlu0 0
      %1156 = vperm.xlu0 %1155, %v1094
      %v1157 = vpop.permute.xlu0 %1156
      %1160 = vset.pattern.permute.xlu0 0
      %1161 = vperm.xlu0 %1160, %v1095
      %v1162 = vpop.permute.xlu0 %1161
      %1165 = vset.pattern.permute.xlu0 0
      %1166 = vperm.xlu0 %1165, %v1096
      %v1167 = vpop.permute.xlu0 %1166
      %1170 = vset.pattern.permute.xlu0 0
      %1171 = vperm.xlu0 %1170, %v1097
      %v1172 = vpop.permute.xlu0 %1171
      %1175 = vset.pattern.permute.xlu0 0
      %1176 = vperm.xlu0 %1175, %v1098
      %v1177 = vpop.permute.xlu0 %1176
      %1180 = vset.pattern.permute.xlu0 0
      %1181 = vperm.xlu0 %1180, %v1099
      %v1182 = vpop.permute.xlu0 %1181
      %1185 = vset.pattern.permute.xlu0 0
      %1186 = vperm.xlu0 %1185, %v1100
      %v1187 = vpop.permute.xlu0 %1186
      %1190 = vset.pattern.permute.xlu0 0
      %1191 = vperm.xlu0 %1190, %v1101
      %v1192 = vpop.permute.xlu0 %1191
      %1195 = vset.pattern.permute.xlu0 0
      %1196 = vperm.xlu0 %1195, %v1102
      %v1197 = vpop.permute.xlu0 %1196
      %1200 = vset.pattern.permute.xlu0 0
      %1201 = vperm.xlu0 %1200, %v1103
      %v1202 = vpop.permute.xlu0 %1201
      %1205 = vset.pattern.permute.xlu0 0
      %1206 = vperm.xlu0 %1205, %v1104
      %v1207 = vpop.permute.xlu0 %1206
      %1210 = vset.pattern.permute.xlu0 0
      %1211 = vperm.xlu0 %1210, %v1105
      %v1212 = vpop.permute.xlu0 %1211
      %1215 = vset.pattern.permute.xlu0 0
      %1216 = vperm.xlu0 %1215, %v1106
      %v1217 = vpop.permute.xlu0 %1216
      %v1219 = vmul.f32 %v721, %v1142
      %v1220 = vmul.f32 %v723, %v1142
      %v1221 = vmul.f32 %v725, %v1147
      %v1222 = vmul.f32 %v727, %v1147
      %v1223 = vmul.f32 %v731, %v1152
      %v1224 = vmul.f32 %v733, %v1152
      %v1225 = vmul.f32 %v735, %v1157
      %v1226 = vmul.f32 %v737, %v1157
      %v1227 = vmul.f32 %v741, %v1162
      %v1228 = vmul.f32 %v743, %v1162
      %v1229 = vmul.f32 %v745, %v1167
      %v1230 = vmul.f32 %v747, %v1167
      %v1231 = vmul.f32 %v751, %v1172
      %v1232 = vmul.f32 %v753, %v1172
      %v1233 = vmul.f32 %v755, %v1177
      %v1234 = vmul.f32 %v757, %v1177
      %v1235 = vmul.f32 %v761, %v1182
      %v1236 = vmul.f32 %v763, %v1182
      %v1237 = vmul.f32 %v765, %v1187
      %v1238 = vmul.f32 %v767, %v1187
      %v1239 = vmul.f32 %v771, %v1192
      %v1240 = vmul.f32 %v773, %v1192
      %v1241 = vmul.f32 %v775, %v1197
      %v1242 = vmul.f32 %v777, %v1197
      %v1243 = vmul.f32 %v781, %v1202
      %v1244 = vmul.f32 %v783, %v1202
      %v1245 = vmul.f32 %v785, %v1207
      %v1246 = vmul.f32 %v787, %v1207
      %v1247 = vmul.f32 %v791, %v1212
      %v1248 = vmul.f32 %v793, %v1212
      %v1249 = vmul.f32 %v795, %v1217
      %v1250 = vmul.f32 %v797, %v1217
      %1252 = vset.pattern.permute.xlu0 0
      %1253 = vperm.xlu0 %1252, %v1123
      %v1254 = vpop.permute.xlu0 %1253
      %1257 = vset.pattern.permute.xlu0 0
      %1258 = vperm.xlu0 %1257, %v1124
      %v1259 = vpop.permute.xlu0 %1258
      %1262 = vset.pattern.permute.xlu0 0
      %1263 = vperm.xlu0 %1262, %v1125
      %v1264 = vpop.permute.xlu0 %1263
      %1267 = vset.pattern.permute.xlu0 0
      %1268 = vperm.xlu0 %1267, %v1126
      %v1269 = vpop.permute.xlu0 %1268
      %1272 = vset.pattern.permute.xlu0 0
      %1273 = vperm.xlu0 %1272, %v1127
      %v1274 = vpop.permute.xlu0 %1273
      %1277 = vset.pattern.permute.xlu0 0
      %1278 = vperm.xlu0 %1277, %v1128
      %v1279 = vpop.permute.xlu0 %1278
      %1282 = vset.pattern.permute.xlu0 0
      %1283 = vperm.xlu0 %1282, %v1129
      %v1284 = vpop.permute.xlu0 %1283
      %1287 = vset.pattern.permute.xlu0 0
      %1288 = vperm.xlu0 %1287, %v1130
      %v1289 = vpop.permute.xlu0 %1288
      %1292 = vset.pattern.permute.xlu0 0
      %1293 = vperm.xlu0 %1292, %v1131
      %v1294 = vpop.permute.xlu0 %1293
      %1297 = vset.pattern.permute.xlu0 0
      %1298 = vperm.xlu0 %1297, %v1132
      %v1299 = vpop.permute.xlu0 %1298
      %1302 = vset.pattern.permute.xlu0 0
      %1303 = vperm.xlu0 %1302, %v1133
      %v1304 = vpop.permute.xlu0 %1303
      %1307 = vset.pattern.permute.xlu0 0
      %1308 = vperm.xlu0 %1307, %v1134
      %v1309 = vpop.permute.xlu0 %1308
      %1312 = vset.pattern.permute.xlu0 0
      %1313 = vperm.xlu0 %1312, %v1135
      %v1314 = vpop.permute.xlu0 %1313
      %1317 = vset.pattern.permute.xlu0 0
      %1318 = vperm.xlu0 %1317, %v1136
      %v1319 = vpop.permute.xlu0 %1318
      %1322 = vset.pattern.permute.xlu0 0
      %1323 = vperm.xlu0 %1322, %v1137
      %v1324 = vpop.permute.xlu0 %1323
      %1327 = vset.pattern.permute.xlu0 0
      %1328 = vperm.xlu0 %1327, %v1138
      %v1329 = vpop.permute.xlu0 %1328
      %v1331 = vadd.f32 %v1219, %v1254
      %v1332 = vadd.f32 %v1220, %v1254
      %v1333 = vadd.f32 %v1221, %v1259
      %v1334 = vadd.f32 %v1222, %v1259
      %v1335 = vadd.f32 %v1223, %v1264
      %v1336 = vadd.f32 %v1224, %v1264
      %v1337 = vadd.f32 %v1225, %v1269
      %v1338 = vadd.f32 %v1226, %v1269
      %v1339 = vadd.f32 %v1227, %v1274
      %v1340 = vadd.f32 %v1228, %v1274
      %v1341 = vadd.f32 %v1229, %v1279
      %v1342 = vadd.f32 %v1230, %v1279
      %v1343 = vadd.f32 %v1231, %v1284
      %v1344 = vadd.f32 %v1232, %v1284
      %v1345 = vadd.f32 %v1233, %v1289
      %v1346 = vadd.f32 %v1234, %v1289
      %v1347 = vadd.f32 %v1235, %v1294
      %v1348 = vadd.f32 %v1236, %v1294
      %v1349 = vadd.f32 %v1237, %v1299
      %v1350 = vadd.f32 %v1238, %v1299
      %v1351 = vadd.f32 %v1239, %v1304
      %v1352 = vadd.f32 %v1240, %v1304
      %v1353 = vadd.f32 %v1241, %v1309
      %v1354 = vadd.f32 %v1242, %v1309
      %v1355 = vadd.f32 %v1243, %v1314
      %v1356 = vadd.f32 %v1244, %v1314
      %v1357 = vadd.f32 %v1245, %v1319
      %v1358 = vadd.f32 %v1246, %v1319
      %v1359 = vadd.f32 %v1247, %v1324
      %v1360 = vadd.f32 %v1248, %v1324
      %v1361 = vadd.f32 %v1249, %v1329
      %v1362 = vadd.f32 %v1250, %v1329
      %1363 = vst [vmem:[%s231] sm:$0xff] %v1331
      %1364 = vst.msk [vmem:[%s231 + $0x8] sm:$0xff] %vm799, %v1332
      %1365 = vst [vmem:[%s231 + $0x10] sm:$0xff] %v1333
      %1366 = vst.msk [vmem:[%s231 + $0x18] sm:$0xff] %vm799, %v1334
      %1367 = vst [vmem:[%s231 + $0x20] sm:$0xff] %v1335
      %1368 = vst.msk [vmem:[%s231 + $0x28] sm:$0xff] %vm799, %v1336
      %1369 = vst [vmem:[%s231 + $0x30] sm:$0xff] %v1337
      %1370 = vst.msk [vmem:[%s231 + $0x38] sm:$0xff] %vm799, %v1338
      %1371 = vst [vmem:[%s231 + $0x40] sm:$0xff] %v1339
      %1372 = vst.msk [vmem:[%s231 + $0x48] sm:$0xff] %vm799, %v1340
      %1373 = vst [vmem:[%s231 + $0x50] sm:$0xff] %v1341
      %1374 = vst.msk [vmem:[%s231 + $0x58] sm:$0xff] %vm799, %v1342
      %1375 = vst [vmem:[%s231 + $0x60] sm:$0xff] %v1343
      %1376 = vst.msk [vmem:[%s231 + $0x68] sm:$0xff] %vm799, %v1344
      %1377 = vst [vmem:[%s231 + $0x70] sm:$0xff] %v1345
      %1378 = vst.msk [vmem:[%s231 + $0x78] sm:$0xff] %vm799, %v1346
      %1379 = vst [vmem:[%s231 + $0x80] sm:$0xff] %v1347
      %1380 = vst.msk [vmem:[%s231 + $0x88] sm:$0xff] %vm799, %v1348
      %1381 = vst [vmem:[%s231 + $0x90] sm:$0xff] %v1349
      %1382 = vst.msk [vmem:[%s231 + $0x98] sm:$0xff] %vm799, %v1350
      %1383 = vst [vmem:[%s231 + $0xa0] sm:$0xff] %v1351
      %1384 = vst.msk [vmem:[%s231 + $0xa8] sm:$0xff] %vm799, %v1352
      %1385 = vst [vmem:[%s231 + $0xb0] sm:$0xff] %v1353
      %1386 = vst.msk [vmem:[%s231 + $0xb8] sm:$0xff] %vm799, %v1354
      %1387 = vst [vmem:[%s231 + $0xc0] sm:$0xff] %v1355
      %1388 = vst.msk [vmem:[%s231 + $0xc8] sm:$0xff] %vm799, %v1356
      %1389 = vst [vmem:[%s231 + $0xd0] sm:$0xff] %v1357
      %1390 = vst.msk [vmem:[%s231 + $0xd8] sm:$0xff] %vm799, %v1358
      %1391 = vst [vmem:[%s231 + $0xe0] sm:$0xff] %v1359
      %1392 = vst.msk [vmem:[%s231 + $0xe8] sm:$0xff] %vm799, %v1360
      %1393 = vst [vmem:[%s231 + $0xf0] sm:$0xff] %v1361
      %1394 = vst.msk [vmem:[%s231 + $0xf8] sm:$0xff] %vm799, %v1362
      %s1395 = smul.u32 16, %s16
      %p1396 = scmp.lt.s32.totalorder %s1395, 31
      %s1397 = scalar_select %p1396, %s1395, 31
      %s1398 = smul.addr %s1397, 2
      %s1399 = smul.addr %s1398, 8
      %s1400 = scalar_lea.vmem %s5, %s1399
      // Predicated region
      $region45: #{tpu_custom_call.1} parent=39 // pred_check
        %p1401 = pneg %p144
      $region46: #{tpu_custom_call.1} parent=39 // pred_check_branch
        %1403 = sbr.rel (%p1401) target = $region48
      $region47: #{tpu_custom_call.1} parent=39 // pred_region
        %s1404 = smul.u32 16, %s16
      $region48: #{tpu_custom_call.1} parent=39 // pred_fallthru
        _
    $region40: #{tpu_custom_call.1} parent=5 // pred_fallthru
      _
    %p1405 = scmp.le.s32.totalorder 2, %s11
    // Predicated region
    $region49: #{tpu_custom_call.1} parent=5 // pred_check
      %p1406 = pneg %p1405
    $region50: #{tpu_custom_call.1} parent=5 // pred_check_branch
      %1408 = sbr.rel (%p1406) target = $region52
    $region51: #{tpu_custom_call.1} parent=5 // pred_region
      %s1409 = ssub.s32 %s11, 2
      // Predicated region
      $region53: #{tpu_custom_call.1} parent=51 // pred_check
        %p1410 = pneg %p150
      $region54: #{tpu_custom_call.1} parent=51 // pred_check_branch
        %1412 = sbr.rel (%p1410) target = $region56
      $region55: #{tpu_custom_call.1} parent=51 // pred_region
        %s1413 = smul.u32 16, %s17
        %p1414 = scmp.lt.s32.totalorder %s1413, 31
        %s1415 = scalar_select %p1414, %s1413, 31
        %s1416 = smul.addr %s1415, 2
        %s1417 = smul.addr %s1416, 8
        %s1418 = scalar_lea.vmem %s5, %s1417
      $region56: #{tpu_custom_call.1} parent=51 // pred_fallthru
        _
    $region52: #{tpu_custom_call.1} parent=5 // pred_fallthru
      _
  $region6: #{tpu_custom_call.1} parent=0 // loop_footer
    %s15 = sadd.s32 1, %s11
  $region7: #{tpu_custom_call.1} parent=0 // loop_footer_branch
    %10 = sbr.rel target = $region3
  $region8: #{tpu_custom_call.1} parent=0 // loop_exit
    _

</llo_original>
